<compile_context>
chip_gen: v6e
topology: v6e:2x2x1
jax: 0.10.0
libtpu: 0.0.40
codegen_flags: <defaults>
</compile_context>

<pallas_src>
import jax
import jax.numpy as jnp
from jax.experimental import pallas as pl
from jax.experimental.pallas import tpu as pltpu


def _conv1_stats_kernel(x_ref, w_ref, y_ref, stats_ref):
    """First 3x3 conv + per-image channel sum / sum-of-squares.

    x_ref    : (1, H, W*Cin)        bf16, lane-folded input rows
    w_ref    : (3, W*Cin, W*Cout)   bf16, width-expanded weights (one per kh)
    y_ref    : (1, H, W*Cout)       bf16, conv output (pre-BN), lane-dense
    stats_ref: (1, 2, Cout)         f32, [sum, sum_sq] per channel for this tile
    """
    wcout = y_ref.shape[2]
    cout = stats_ref.shape[2]

    x = x_ref[0]                                        # (H, W*Cin) bf16
    zrow = jnp.zeros((1, x.shape[1]), x.dtype)
    x_up = jnp.concatenate([zrow, x[:-1]], axis=0)      # row h-1 (zero top halo)
    x_dn = jnp.concatenate([x[1:], zrow], axis=0)       # row h+1 (zero bottom halo)

    acc = jnp.dot(x_up, w_ref[0], preferred_element_type=jnp.float32)
    acc += jnp.dot(x, w_ref[1], preferred_element_type=jnp.float32)
    acc += jnp.dot(x_dn, w_ref[2], preferred_element_type=jnp.float32)
    # acc: (H, W*Cout) f32 — ~16 vregs, stays in registers.

    y_ref[0] = acc.astype(y_ref.dtype)

    # Per-channel statistics: channel = lane % Cout.  Reduce rows on the VPU,
    # then group lanes per channel with a tiny 0/1 matmul (lane-friendly).
    colsum = jnp.sum(acc, axis=0, keepdims=True)        # (1, W*Cout)
    colsq = jnp.sum(acc * acc, axis=0, keepdims=True)   # (1, W*Cout)
    grp = (jax.lax.broadcasted_iota(jnp.int32, (wcout, cout), 0) % cout ==
           jax.lax.broadcasted_iota(jnp.int32, (wcout, cout), 1)
           ).astype(jnp.float32)
    both = jnp.concatenate([colsum, colsq], axis=0)     # (2, W*Cout)
    stats_ref[0] = jnp.dot(both, grp, preferred_element_type=jnp.float32)


def _bn_relu_conv2_kernel(y_ref, scale_ref, bias_ref, w_ref, o_ref):
    """Fused: y*scale+bias -> ReLU -> 3x3 conv -> ReLU.

    y_ref    : (1, H, W*Cout)        bf16, first-conv output
    scale_ref: (1, W*Cout)           f32, BN scale folded & lane-tiled
    bias_ref : (1, W*Cout)           f32, BN bias folded & lane-tiled
    w_ref    : (3, W*Cout, W*Cout)   bf16, width-expanded second-conv weights
    o_ref    : (1, H, W*Cout)        f32, final output, lane-dense
    """
    z = jnp.maximum(y_ref[0].astype(jnp.float32) * scale_ref[...] + bias_ref[...],
                    0.0)
    z = z.astype(w_ref.dtype)                           # bf16 for the MXU

    zrow = jnp.zeros((1, z.shape[1]), z.dtype)
    z_up = jnp.concatenate([zrow, z[:-1]], axis=0)
    z_dn = jnp.concatenate([z[1:], zrow], axis=0)

    acc = jnp.dot(z_up, w_ref[0], preferred_element_type=jnp.float32)
    acc += jnp.dot(z, w_ref[1], preferred_element_type=jnp.float32)
    acc += jnp.dot(z_dn, w_ref[2], preferred_element_type=jnp.float32)

    o_ref[0] = jnp.maximum(acc, 0.0).astype(o_ref.dtype)


def _expand_conv_weights(w_oihw, width):
    """OIHW (Co, Ci, 3, 3) -> per-kh width-expanded RHS (3, W*Ci, W*Co).

    big[kh, wi*Ci + ci, wo*Co + co] = w[kh, wi-wo+1, ci, co] if 0<=wi-wo+1<3 else 0
    so horizontal padding (pad=1) is baked into the expanded weights.
    """
    co, ci, kh, kw = w_oihw.shape
    w = jnp.transpose(w_oihw, (2, 3, 1, 0)).astype(jnp.float32)   # HWIO
    wo = jnp.arange(width)
    wi = jnp.arange(width)
    tap = wi[None, :] - wo[:, None] + 1                  # (W_out, W_in)
    valid = (tap >= 0) & (tap < kw)
    tap_c = jnp.clip(tap, 0, kw - 1)
    g = w[:, tap_c]                                      # (3, W_out, W_in, Ci, Co)
    g = jnp.where(valid[None, :, :, None, None], g, 0.0)
    g = jnp.transpose(g, (0, 2, 3, 1, 4))                # (3, W_in, Ci, W_out, Co)
    return g.reshape(kh, width * ci, width * co)


def twice_conv(x_nchw, w1_oihw, gamma, beta, w2_oihw, eps=1e-5):
    """Pallas TwiceConv.forward (module in default train mode: BatchNorm uses the
    current batch's mean / biased variance)."""
    n, cin, h, w = x_nchw.shape
    cout = w1_oihw.shape[0]

    # NCHW -> NHWC -> lane-folded (N, H, W*Cin), bf16 operands for the MXU.
    x = jnp.transpose(x_nchw, (0, 2, 3, 1)).reshape(n, h, w * cin)
    x = x.astype(jnp.bfloat16)

    w1e = _expand_conv_weights(w1_oihw, w).astype(jnp.bfloat16)   # (3, W*Cin, W*Cout)
    w2e = _expand_conv_weights(w2_oihw, w).astype(jnp.bfloat16)   # (3, W*Cout, W*Cout)

    # ---- kernel 1: conv1 + per-tile BN statistics, grid over the batch --------
    y1, stats = pl.pallas_call(
        _conv1_stats_kernel,
        out_shape=(jax.ShapeDtypeStruct((n, h, w * cout), jnp.bfloat16),
                   jax.ShapeDtypeStruct((n, 2, cout), jnp.float32)),
        grid=(n,),
        in_specs=[pl.BlockSpec((1, h, w * cin), lambda i: (i, 0, 0)),
                  pl.BlockSpec((3, w * cin, w * cout), lambda i: (0, 0, 0))],
        out_specs=(pl.BlockSpec((1, h, w * cout), lambda i: (i, 0, 0)),
                   pl.BlockSpec((1, 2, cout), lambda i: (i, 0, 0))),
        compiler_params=pltpu.CompilerParams(dimension_semantics=("parallel",)),
    )(x, w1e)

    # ---- fold train-mode BatchNorm into per-channel scale/bias (O(C) glue) ----
    cnt = jnp.float32(n * h * w)
    ch_sum = jnp.sum(stats[:, 0, :], axis=0)
    ch_sq = jnp.sum(stats[:, 1, :], axis=0)
    mean = ch_sum / cnt
    var = jnp.maximum(ch_sq / cnt - mean * mean, 0.0)    # guard cancellation
    scale_c = gamma.astype(jnp.float32) / jnp.sqrt(var + eps)
    bias_c = beta.astype(jnp.float32) - mean * scale_c
    scale = jnp.tile(scale_c, w)[None, :]                # (1, W*Cout) lane-folded
    bias = jnp.tile(bias_c, w)[None, :]

    # ---- kernel 2: BN-apply + ReLU + conv2 + ReLU, grid over the batch --------
    out = pl.pallas_call(
        _bn_relu_conv2_kernel,
        out_shape=jax.ShapeDtypeStruct((n, h, w * cout), jnp.float32),
        grid=(n,),
        in_specs=[pl.BlockSpec((1, h, w * cout), lambda i: (i, 0, 0)),
                  pl.BlockSpec((1, w * cout), lambda i: (0, 0)),
                  pl.BlockSpec((1, w * cout), lambda i: (0, 0)),
                  pl.BlockSpec((3, w * cout, w * cout), lambda i: (0, 0, 0))],
        out_specs=pl.BlockSpec((1, h, w * cout), lambda i: (i, 0, 0)),
        compiler_params=pltpu.CompilerParams(dimension_semantics=("parallel",)),
    )(y1, scale, bias, w2e)

    out = out.reshape(n, h, w, cout)                     # un-fold lanes
    return jnp.transpose(out, (0, 3, 1, 2))              # NHWC -> NCHW


def _reference(x, w1, gamma, beta, w2, eps=1e-5):
    """Pure-JAX (f32) reference matching the PyTorch forward (train-mode BN)."""
    dn = ("NCHW", "OIHW", "NCHW")
    y1 = jax.lax.conv_general_dilated(x, w1, (1, 1), ((1, 1), (1, 1)),
                                      dimension_numbers=dn)
    mean = y1.mean(axis=(0, 2, 3), keepdims=True)
    var = y1.var(axis=(0, 2, 3), keepdims=True)
    z = (y1 - mean) / jnp.sqrt(var + eps)
    z = z * gamma[None, :, None, None] + beta[None, :, None, None]
    z = jnp.maximum(z, 0.0)
    y2 = jax.lax.conv_general_dilated(z, w2, (1, 1), ((1, 1), (1, 1)),
                                      dimension_numbers=dn)
    return jnp.maximum(y2, 0.0)


if __name__ == "__main__":
    key = jax.random.PRNGKey(0)
    k_x, k_w1, k_w2, k_g, k_b = jax.random.split(key, 5)

    N, Cin, Cout, H, W = 2, 4, 8, 16, 16

    x = jax.random.normal(k_x, (N, Cin, H, W), jnp.float32)
    # Conv2d weights (OIHW, bias=False); BatchNorm affine params.
    w1 = 0.2 * jax.random.normal(k_w1, (Cout, Cin, 3, 3), jnp.float32)
    w2 = 0.2 * jax.random.normal(k_w2, (Cout, Cout, 3, 3), jnp.float32)
    gamma = 1.0 + 0.1 * jax.random.normal(k_g, (Cout,), jnp.float32)
    beta = 0.1 * jax.random.normal(k_b, (Cout,), jnp.float32)

    fn = jax.jit(twice_conv)
    out = jax.block_until_ready(fn(x, w1, gamma, beta, w2))

    ref = _reference(x, w1, gamma, beta, w2)
    assert out.shape == ref.shape == (N, Cout, H, W)
    # Tolerance sized for bf16 MXU operands (f32 accumulation).
    assert jnp.allclose(out, ref, atol=5e-2, rtol=5e-2)

    print("KERNEL_OK")
</pallas_src>

<mosaic_0001>
module attributes {stable_mosaic.version = 11 : i64} {
  func.func @_conv1_stats_kernel(%arg0: i32, %arg1: memref<1x16x64xbf16, #tpu.memory_space<vmem>>, %arg2: memref<3x64x128xbf16, #tpu.memory_space<vmem>>, %arg3: memref<1x16x128xbf16, #tpu.memory_space<vmem>>, %arg4: memref<1x2x8xf32, #tpu.memory_space<vmem>>) attributes {dimension_semantics = [#tpu.dimension_semantics<parallel>], iteration_bounds = array<i64: 2>, scalar_prefetch = 0 : i64, scratch_operands = 0 : i64, tpu.core_type = #tpu.core_type<tc>, window_params = [{transform_indices = @transform_0, window_bounds = array<i64: 1, 16, 64>}, {pipeline_mode = #tpu.pipeline_mode<synchronous>, transform_indices = @transform_1, window_bounds = array<i64: 3, 64, 128>}, {transform_indices = @transform_2, window_bounds = array<i64: 1, 16, 128>}, {transform_indices = @transform_3, window_bounds = array<i64: 1, 2, 8>}]} {
    %c0 = arith.constant 0 : index
    %c0_0 = arith.constant 0 : index
    %c0_1 = arith.constant 0 : index
    %0 = vector.load %arg1[%c0, %c0_0, %c0_1] : memref<1x16x64xbf16, #tpu.memory_space<vmem>>, vector<1x16x64xbf16>
    %1 = vector.shape_cast %0 : vector<1x16x64xbf16> to vector<16x64xbf16>
    %cst = arith.constant 0.000000e+00 : bf16
    %2 = vector.broadcast %cst : bf16 to vector<1x64xbf16>
    %3 = vector.extract_strided_slice %1 {offsets = [0, 0], sizes = [15, 64], strides = [1, 1]} : vector<16x64xbf16> to vector<15x64xbf16>
    %4 = tpu.concatenate %2, %3 in 0 : vector<1x64xbf16>, vector<15x64xbf16> -> vector<16x64xbf16>
    %5 = vector.extract_strided_slice %1 {offsets = [1, 0], sizes = [15, 64], strides = [1, 1]} : vector<16x64xbf16> to vector<15x64xbf16>
    %6 = tpu.concatenate %5, %2 in 0 : vector<15x64xbf16>, vector<1x64xbf16> -> vector<16x64xbf16>
    %c0_2 = arith.constant 0 : index
    %c0_3 = arith.constant 0 : index
    %c0_4 = arith.constant 0 : index
    %7 = vector.load %arg2[%c0_2, %c0_3, %c0_4] : memref<3x64x128xbf16, #tpu.memory_space<vmem>>, vector<1x64x128xbf16>
    %8 = vector.shape_cast %7 : vector<1x64x128xbf16> to vector<64x128xbf16>
    %cst_5 = arith.constant dense<0.000000e+00> : vector<16x128xf32>
    %9 = tpu.matmul %4, %8, %cst_5 {dimension_numbers = #tpu.dot_dimension_numbers<[1], [0], [0], [1], [0, 0, 1, 1], [], []>} : vector<16x64xbf16>, vector<64x128xbf16>, vector<16x128xf32> -> vector<16x128xf32>
    %c1 = arith.constant 1 : index
    %c0_6 = arith.constant 0 : index
    %c0_7 = arith.constant 0 : index
    %10 = vector.load %arg2[%c1, %c0_6, %c0_7] : memref<3x64x128xbf16, #tpu.memory_space<vmem>>, vector<1x64x128xbf16>
    %11 = vector.shape_cast %10 : vector<1x64x128xbf16> to vector<64x128xbf16>
    %cst_8 = arith.constant dense<0.000000e+00> : vector<16x128xf32>
    %12 = tpu.matmul %1, %11, %cst_8 {dimension_numbers = #tpu.dot_dimension_numbers<[1], [0], [0], [1], [0, 0, 1, 1], [], []>} : vector<16x64xbf16>, vector<64x128xbf16>, vector<16x128xf32> -> vector<16x128xf32>
    %13 = arith.addf %9, %12 : vector<16x128xf32>
    %c2 = arith.constant 2 : index
    %c0_9 = arith.constant 0 : index
    %c0_10 = arith.constant 0 : index
    %14 = vector.load %arg2[%c2, %c0_9, %c0_10] : memref<3x64x128xbf16, #tpu.memory_space<vmem>>, vector<1x64x128xbf16>
    %15 = vector.shape_cast %14 : vector<1x64x128xbf16> to vector<64x128xbf16>
    %cst_11 = arith.constant dense<0.000000e+00> : vector<16x128xf32>
    %16 = tpu.matmul %6, %15, %cst_11 {dimension_numbers = #tpu.dot_dimension_numbers<[1], [0], [0], [1], [0, 0, 1, 1], [], []>} : vector<16x64xbf16>, vector<64x128xbf16>, vector<16x128xf32> -> vector<16x128xf32>
    %17 = arith.addf %13, %16 : vector<16x128xf32>
    %18 = arith.truncf %17 : vector<16x128xf32> to vector<16x128xbf16>
    %c0_12 = arith.constant 0 : index
    %c0_13 = arith.constant 0 : index
    %c0_14 = arith.constant 0 : index
    %19 = vector.load %arg3[%c0_12, %c0_13, %c0_14] : memref<1x16x128xbf16, #tpu.memory_space<vmem>>, vector<1x16x128xbf16>
    %20 = vector.shape_cast %19 : vector<1x16x128xbf16> to vector<16x128xbf16>
    %21 = vector.shape_cast %18 : vector<16x128xbf16> to vector<1x16x128xbf16>
    tpu.vector_store %arg3[%c0_12, %c0_13, %c0_14], %21 {strides = array<i32>} : memref<1x16x128xbf16, #tpu.memory_space<vmem>>, vector<1x16x128xbf16>,
    %cst_15 = arith.constant dense<0.000000e+00> : vector<128xf32>
    %22 = vector.multi_reduction <add>, %17, %cst_15 [0] : vector<16x128xf32> to vector<128xf32>
    %23 = vector.shape_cast %22 : vector<128xf32> to vector<1x128xf32>
    %24 = arith.mulf %17, %17 : vector<16x128xf32>
    %cst_16 = arith.constant dense<0.000000e+00> : vector<128xf32>
    %25 = vector.multi_reduction <add>, %24, %cst_16 [0] : vector<16x128xf32> to vector<128xf32>
    %26 = vector.shape_cast %25 : vector<128xf32> to vector<1x128xf32>
    %27 = tpu.iota {dimensions = array<i32: 0>} : vector<128x8xi32>
    %c8_i32 = arith.constant 8 : i32
    %c0_i32 = arith.constant 0 : i32
    %28 = arith.cmpi eq, %c8_i32, %c0_i32 : i32
    %c1_i32 = arith.constant 1 : i32
    %29 = arith.select %28, %c1_i32, %c8_i32 : i32
    %30 = vector.broadcast %29 : i32 to vector<128x8xi32>
    %31 = arith.remsi %27, %30 : vector<128x8xi32>
    %c0_i32_17 = arith.constant 0 : i32
    %32 = vector.broadcast %c0_i32_17 : i32 to vector<128x8xi32>
    %33 = arith.cmpi ne, %31, %32 : vector<128x8xi32>
    %c0_i32_18 = arith.constant 0 : i32
    %34 = vector.broadcast %c0_i32_18 : i32 to vector<128x8xi32>
    %35 = arith.cmpi slt, %31, %34 : vector<128x8xi32>
    %c0_i32_19 = arith.constant 0 : i32
    %36 = arith.cmpi slt, %29, %c0_i32_19 : i32
    %37 = vector.broadcast %36 : i1 to vector<128x8xi1>
    %38 = vector.broadcast %37 : vector<128x8xi1> to vector<128x8xi1>
    %39 = arith.xori %35, %38 : vector<128x8xi1>
    %40 = arith.andi %39, %33 : vector<128x8xi1>
    %41 = vector.broadcast %29 : i32 to vector<128x8xi32>
    %42 = arith.addi %31, %41 : vector<128x8xi32>
    %43 = arith.select %40, %42, %31 : vector<128x8xi1>, vector<128x8xi32>
    %44 = tpu.iota {dimensions = array<i32: 1>} : vector<128x8xi32>
    %45 = arith.cmpi eq, %43, %44 : vector<128x8xi32>
    %46 = arith.extui %45 : vector<128x8xi1> to vector<128x8xi32>
    %47 = arith.sitofp %46 : vector<128x8xi32> to vector<128x8xf32>
    %48 = tpu.concatenate %23, %26 in 0 : vector<1x128xf32>, vector<1x128xf32> -> vector<2x128xf32>
    %cst_20 = arith.constant dense<0.000000e+00> : vector<2x8xf32>
    %49 = tpu.matmul %48, %47, %cst_20 {dimension_numbers = #tpu.dot_dimension_numbers<[1], [0], [0], [1], [0, 0, 1, 1], [], []>} : vector<2x128xf32>, vector<128x8xf32>, vector<2x8xf32> -> vector<2x8xf32>
    %c0_21 = arith.constant 0 : index
    %c0_22 = arith.constant 0 : index
    %c0_23 = arith.constant 0 : index
    %50 = vector.load %arg4[%c0_21, %c0_22, %c0_23] : memref<1x2x8xf32, #tpu.memory_space<vmem>>, vector<1x2x8xf32>
    %51 = vector.shape_cast %50 : vector<1x2x8xf32> to vector<2x8xf32>
    %52 = vector.shape_cast %49 : vector<2x8xf32> to vector<1x2x8xf32>
    tpu.vector_store %arg4[%c0_21, %c0_22, %c0_23], %52 {strides = array<i32>} : memref<1x2x8xf32, #tpu.memory_space<vmem>>, vector<1x2x8xf32>,
    return
  }
  func.func @transform_0(%arg0: i32) -> (i32, i32, i32) {
    %c0_i32 = arith.constant 0 : i32
    %c0_i32_0 = arith.constant 0 : i32
    %c0_i32_1 = arith.constant 0 : i32
    return %arg0, %c0_i32, %c0_i32_0 : i32, i32, i32
  }
  func.func @transform_1(%arg0: i32) -> (i32, i32, i32) {
    %c0_i32 = arith.constant 0 : i32
    %c0_i32_0 = arith.constant 0 : i32
    %c0_i32_1 = arith.constant 0 : i32
    %c0_i32_2 = arith.constant 0 : i32
    return %c0_i32, %c0_i32_0, %c0_i32_1 : i32, i32, i32
  }
  func.func @transform_2(%arg0: i32) -> (i32, i32, i32) {
    %c0_i32 = arith.constant 0 : i32
    %c0_i32_0 = arith.constant 0 : i32
    %c0_i32_1 = arith.constant 0 : i32
    return %arg0, %c0_i32, %c0_i32_0 : i32, i32, i32
  }
  func.func @transform_3(%arg0: i32) -> (i32, i32, i32) {
    %c0_i32 = arith.constant 0 : i32
    %c0_i32_0 = arith.constant 0 : i32
    %c0_i32_1 = arith.constant 0 : i32
    return %arg0, %c0_i32, %c0_i32_0 : i32, i32, i32
  }
}

module attributes {stable_mosaic.version = 11 : i64} {
  func.func @_bn_relu_conv2_kernel(%arg0: i32, %arg1: memref<1x16x128xbf16, #tpu.memory_space<vmem>>, %arg2: memref<1x128xf32, #tpu.memory_space<vmem>>, %arg3: memref<1x128xf32, #tpu.memory_space<vmem>>, %arg4: memref<3x128x128xbf16, #tpu.memory_space<vmem>>, %arg5: memref<1x16x128xf32, #tpu.memory_space<vmem>>) attributes {dimension_semantics = [#tpu.dimension_semantics<parallel>], iteration_bounds = array<i64: 2>, scalar_prefetch = 0 : i64, scratch_operands = 0 : i64, tpu.core_type = #tpu.core_type<tc>, window_params = [{transform_indices = @transform_0, window_bounds = array<i64: 1, 16, 128>}, {pipeline_mode = #tpu.pipeline_mode<synchronous>, transform_indices = @transform_1, window_bounds = array<i64: 1, 128>}, {pipeline_mode = #tpu.pipeline_mode<synchronous>, transform_indices = @transform_2, window_bounds = array<i64: 1, 128>}, {pipeline_mode = #tpu.pipeline_mode<synchronous>, transform_indices = @transform_3, window_bounds = array<i64: 3, 128, 128>}, {transform_indices = @transform_4, window_bounds = array<i64: 1, 16, 128>}]} {
    %c0 = arith.constant 0 : index
    %c0_0 = arith.constant 0 : index
    %c0_1 = arith.constant 0 : index
    %0 = vector.load %arg1[%c0, %c0_0, %c0_1] : memref<1x16x128xbf16, #tpu.memory_space<vmem>>, vector<1x16x128xbf16>
    %1 = vector.shape_cast %0 : vector<1x16x128xbf16> to vector<16x128xbf16>
    %2 = arith.extf %1 : vector<16x128xbf16> to vector<16x128xf32>
    %c0_2 = arith.constant 0 : index
    %c0_3 = arith.constant 0 : index
    %3 = vector.load %arg2[%c0_2, %c0_3] : memref<1x128xf32, #tpu.memory_space<vmem>>, vector<1x128xf32>
    %4 = vector.broadcast %3 : vector<1x128xf32> to vector<16x128xf32>
    %5 = arith.mulf %2, %4 : vector<16x128xf32>
    %c0_4 = arith.constant 0 : index
    %c0_5 = arith.constant 0 : index
    %6 = vector.load %arg3[%c0_4, %c0_5] : memref<1x128xf32, #tpu.memory_space<vmem>>, vector<1x128xf32>
    %7 = vector.broadcast %6 : vector<1x128xf32> to vector<16x128xf32>
    %8 = arith.addf %5, %7 : vector<16x128xf32>
    %cst = arith.constant 0.000000e+00 : f32
    %9 = vector.broadcast %cst : f32 to vector<16x128xf32>
    %10 = arith.maximumf %8, %9 : vector<16x128xf32>
    %11 = arith.truncf %10 : vector<16x128xf32> to vector<16x128xbf16>
    %cst_6 = arith.constant 0.000000e+00 : bf16
    %12 = vector.broadcast %cst_6 : bf16 to vector<1x128xbf16>
    %13 = vector.extract_strided_slice %11 {offsets = [0, 0], sizes = [15, 128], strides = [1, 1]} : vector<16x128xbf16> to vector<15x128xbf16>
    %14 = tpu.concatenate %12, %13 in 0 : vector<1x128xbf16>, vector<15x128xbf16> -> vector<16x128xbf16>
    %15 = vector.extract_strided_slice %11 {offsets = [1, 0], sizes = [15, 128], strides = [1, 1]} : vector<16x128xbf16> to vector<15x128xbf16>
    %16 = tpu.concatenate %15, %12 in 0 : vector<15x128xbf16>, vector<1x128xbf16> -> vector<16x128xbf16>
    %c0_7 = arith.constant 0 : index
    %c0_8 = arith.constant 0 : index
    %c0_9 = arith.constant 0 : index
    %17 = vector.load %arg4[%c0_7, %c0_8, %c0_9] : memref<3x128x128xbf16, #tpu.memory_space<vmem>>, vector<1x128x128xbf16>
    %18 = vector.shape_cast %17 : vector<1x128x128xbf16> to vector<128x128xbf16>
    %cst_10 = arith.constant dense<0.000000e+00> : vector<16x128xf32>
    %19 = tpu.matmul %14, %18, %cst_10 {dimension_numbers = #tpu.dot_dimension_numbers<[1], [0], [0], [1], [0, 0, 1, 1], [], []>} : vector<16x128xbf16>, vector<128x128xbf16>, vector<16x128xf32> -> vector<16x128xf32>
    %c1 = arith.constant 1 : index
    %c0_11 = arith.constant 0 : index
    %c0_12 = arith.constant 0 : index
    %20 = vector.load %arg4[%c1, %c0_11, %c0_12] : memref<3x128x128xbf16, #tpu.memory_space<vmem>>, vector<1x128x128xbf16>
    %21 = vector.shape_cast %20 : vector<1x128x128xbf16> to vector<128x128xbf16>
    %cst_13 = arith.constant dense<0.000000e+00> : vector<16x128xf32>
    %22 = tpu.matmul %11, %21, %cst_13 {dimension_numbers = #tpu.dot_dimension_numbers<[1], [0], [0], [1], [0, 0, 1, 1], [], []>} : vector<16x128xbf16>, vector<128x128xbf16>, vector<16x128xf32> -> vector<16x128xf32>
    %23 = arith.addf %19, %22 : vector<16x128xf32>
    %c2 = arith.constant 2 : index
    %c0_14 = arith.constant 0 : index
    %c0_15 = arith.constant 0 : index
    %24 = vector.load %arg4[%c2, %c0_14, %c0_15] : memref<3x128x128xbf16, #tpu.memory_space<vmem>>, vector<1x128x128xbf16>
    %25 = vector.shape_cast %24 : vector<1x128x128xbf16> to vector<128x128xbf16>
    %cst_16 = arith.constant dense<0.000000e+00> : vector<16x128xf32>
    %26 = tpu.matmul %16, %25, %cst_16 {dimension_numbers = #tpu.dot_dimension_numbers<[1], [0], [0], [1], [0, 0, 1, 1], [], []>} : vector<16x128xbf16>, vector<128x128xbf16>, vector<16x128xf32> -> vector<16x128xf32>
    %27 = arith.addf %23, %26 : vector<16x128xf32>
    %cst_17 = arith.constant 0.000000e+00 : f32
    %28 = vector.broadcast %cst_17 : f32 to vector<16x128xf32>
    %29 = arith.maximumf %27, %28 : vector<16x128xf32>
    %c0_18 = arith.constant 0 : index
    %c0_19 = arith.constant 0 : index
    %c0_20 = arith.constant 0 : index
    %30 = vector.load %arg5[%c0_18, %c0_19, %c0_20] : memref<1x16x128xf32, #tpu.memory_space<vmem>>, vector<1x16x128xf32>
    %31 = vector.shape_cast %30 : vector<1x16x128xf32> to vector<16x128xf32>
    %32 = vector.shape_cast %29 : vector<16x128xf32> to vector<1x16x128xf32>
    tpu.vector_store %arg5[%c0_18, %c0_19, %c0_20], %32 {strides = array<i32>} : memref<1x16x128xf32, #tpu.memory_space<vmem>>, vector<1x16x128xf32>,
    return
  }
  func.func @transform_0(%arg0: i32) -> (i32, i32, i32) {
    %c0_i32 = arith.constant 0 : i32
    %c0_i32_0 = arith.constant 0 : i32
    %c0_i32_1 = arith.constant 0 : i32
    return %arg0, %c0_i32, %c0_i32_0 : i32, i32, i32
  }
  func.func @transform_1(%arg0: i32) -> (i32, i32) {
    %c0_i32 = arith.constant 0 : i32
    %c0_i32_0 = arith.constant 0 : i32
    %c0_i32_1 = arith.constant 0 : i32
    return %c0_i32, %c0_i32_0 : i32, i32
  }
  func.func @transform_2(%arg0: i32) -> (i32, i32) {
    %c0_i32 = arith.constant 0 : i32
    %c0_i32_0 = arith.constant 0 : i32
    %c0_i32_1 = arith.constant 0 : i32
    return %c0_i32, %c0_i32_0 : i32, i32
  }
  func.func @transform_3(%arg0: i32) -> (i32, i32, i32) {
    %c0_i32 = arith.constant 0 : i32
    %c0_i32_0 = arith.constant 0 : i32
    %c0_i32_1 = arith.constant 0 : i32
    %c0_i32_2 = arith.constant 0 : i32
    return %c0_i32, %c0_i32_0, %c0_i32_1 : i32, i32, i32
  }
  func.func @transform_4(%arg0: i32) -> (i32, i32, i32) {
    %c0_i32 = arith.constant 0 : i32
    %c0_i32_0 = arith.constant 0 : i32
    %c0_i32_1 = arith.constant 0 : i32
    return %arg0, %c0_i32, %c0_i32_0 : i32, i32, i32
  }
}

</mosaic_0001>

<llo_original>
// kernel: twice_conv.2
$region0: #{twice_conv.2}
  #allocation0 [shape = 'u32[]', space=smem, size = 0x4, offset = 0x4, fixed_abs, tag = 'smem constant byte address 0x4 - core index']
  #allocation1 [shape = 'u32[144,128]{1,0:T(1,128)}', space=vmem, size = 0x12000, scoped, tag = 'internal scratch']
  %s0 = inlined_call_operand.vmem [shape: bf16[2,16,64], index: 0, kind: input, shape index: {}]
  %s1 = inlined_call_operand.vmem [shape: bf16[3,64,128], index: 1, kind: input, shape index: {}]
  %s2 = inlined_call_operand.vmem [shape: bf16[2,16,128], index: 2, kind: output, shape index: {0}]
  %s3 = inlined_call_operand.vmem [shape: f32[2,2,8], index: 3, kind: output, shape index: {1}]
  %4 = xla_tuple %s2, %s3
  %s5 = sld [smem:[#allocation0]]
  $region49: #{twice_conv.2} parent=0
    _
  %s7 = ssub.s32 1, %s5
  %s8 = scalar_select 0, %s7, %s5
  loop: start=0, step=1, limit=4
  $region2: #{twice_conv.2} parent=0 // loop_pre_header
    _
  $region3: #{twice_conv.2} parent=0 // loop_header
    %s10 = sphi 0, %s14
    %p11 = scmp.ge.s32.totalorder %s10, 4
    %s20 = sphi 0, %s22
    %s23 = sphi 0, %s20
    %s24 = sphi 0, %s23
    %s40 = sphi 0, %s24
    %s44 = sphi 0, %s44
    %s46 = sphi 0, %s44
    %s47 = sphi 0, %s46
    %s61 = sphi 0, %s47
    %s67 = sphi 0, %s69
    %s70 = sphi 0, %s67
    %s71 = sphi 0, %s70
    %s87 = sphi 0, %s71
    %s93 = sphi 0, %s95
    %s96 = sphi 0, %s93
    %s97 = sphi 0, %s96
    %s113 = sphi 0, %s97
  $region4: #{twice_conv.2} parent=0 // loop_header_branch
    %13 = sbr.rel (%p11) target = $region8
  $region5: #{twice_conv.2} parent=0 // loop_body
    %s15 = ssub.s32 %s10, 1
    %s16 = ssub.s32 %s10, 2
    %s17 = sadd.s32 %s10, 1
    %s18 = ssub.s32 %s10, %s17
    %p19 = scmp.eq.s32.totalorder %s18, 0
    %s21 = sadd.s32 %s20, 1
    %s22 = scalar_select %p19, %s20, %s21
    %p25 = pneg %p19
    %p26 = scmp.eq.s32.totalorder %s10, 1
    %p27 = por %p25, %p26
    %p28 = scmp.ne.s32.totalorder %s20, %s23
    %p29 = scmp.eq.s32.totalorder %s10, 0
    %p30 = por %p28, %p29
    %p31 = scmp.ne.s32.totalorder %s20, %s23
    %p32 = scmp.eq.s32.totalorder %s15, 1
    %p33 = por %p31, %p32
    %p34 = scmp.ne.s32.totalorder %s23, %s24
    %p35 = scmp.eq.s32.totalorder %s15, 0
    %p36 = por %p34, %p35
    %p37 = scmp.ne.s32.totalorder %s23, %s24
    %p38 = scmp.eq.s32.totalorder %s16, 1
    %p39 = por %p37, %p38
    %p41 = scmp.ne.s32.totalorder %s24, %s40
    %p42 = scmp.eq.s32.totalorder %s16, 0
    %p43 = por %p41, %p42
    %s45 = sadd.s32 %s44, 1
    %p48 = scmp.eq.s32.totalorder %s10, 1
    %p49 = scmp.ne.s32.totalorder %s44, %s46
    %p50 = scmp.eq.s32.totalorder %s10, 0
    %p51 = por %p49, %p50
    %p52 = scmp.ne.s32.totalorder %s44, %s46
    %p53 = scmp.eq.s32.totalorder %s15, 1
    %p54 = por %p52, %p53
    %p55 = scmp.ne.s32.totalorder %s46, %s47
    %p56 = scmp.eq.s32.totalorder %s15, 0
    %p57 = por %p55, %p56
    %p58 = scmp.ne.s32.totalorder %s46, %s47
    %p59 = scmp.eq.s32.totalorder %s16, 1
    %p60 = por %p58, %p59
    %p62 = scmp.ne.s32.totalorder %s47, %s61
    %p63 = scmp.eq.s32.totalorder %s16, 0
    %p64 = por %p62, %p63
    %s65 = ssub.s32 %s10, %s17
    %p66 = scmp.eq.s32.totalorder %s65, 0
    %s68 = sadd.s32 %s67, 1
    %s69 = scalar_select %p66, %s67, %s68
    %p72 = pneg %p66
    %p73 = scmp.eq.s32.totalorder %s10, 1
    %p74 = por %p72, %p73
    %p75 = scmp.ne.s32.totalorder %s67, %s70
    %p76 = scmp.eq.s32.totalorder %s10, 0
    %p77 = por %p75, %p76
    %p78 = scmp.ne.s32.totalorder %s67, %s70
    %p79 = scmp.eq.s32.totalorder %s15, 1
    %p80 = por %p78, %p79
    %p81 = scmp.ne.s32.totalorder %s70, %s71
    %p82 = scmp.eq.s32.totalorder %s15, 0
    %p83 = por %p81, %p82
    %p84 = scmp.ne.s32.totalorder %s70, %s71
    %p85 = scmp.eq.s32.totalorder %s16, 1
    %p86 = por %p84, %p85
    %p88 = scmp.ne.s32.totalorder %s71, %s87
    %p89 = scmp.eq.s32.totalorder %s16, 0
    %p90 = por %p88, %p89
    %s91 = ssub.s32 %s10, %s17
    %p92 = scmp.eq.s32.totalorder %s91, 0
    %s94 = sadd.s32 %s93, 1
    %s95 = scalar_select %p92, %s93, %s94
    %p98 = pneg %p92
    %p99 = scmp.eq.s32.totalorder %s10, 1
    %p100 = por %p98, %p99
    %p101 = scmp.ne.s32.totalorder %s93, %s96
    %p102 = scmp.eq.s32.totalorder %s10, 0
    %p103 = por %p101, %p102
    %p104 = scmp.ne.s32.totalorder %s93, %s96
    %p105 = scmp.eq.s32.totalorder %s15, 1
    %p106 = por %p104, %p105
    %p107 = scmp.ne.s32.totalorder %s96, %s97
    %p108 = scmp.eq.s32.totalorder %s15, 0
    %p109 = por %p107, %p108
    %p110 = scmp.ne.s32.totalorder %s96, %s97
    %p111 = scmp.eq.s32.totalorder %s16, 1
    %p112 = por %p110, %p111
    %p114 = scmp.ne.s32.totalorder %s97, %s113
    %p115 = scmp.eq.s32.totalorder %s16, 0
    %p116 = por %p114, %p115
    %p117 = scmp.le.s32.totalorder 1, %s10
    %p118 = scmp.lt.s32.totalorder %s10, 3
    %p119 = pnand %p117, %p118
    %p120 = pneg %p119
    // Predicated region
    $region9: #{twice_conv.2} parent=5 // pred_check
      _
    $region10: #{twice_conv.2} parent=5 // pred_check_branch
      %122 = sbr.rel (%p119) target = $region12
    $region11: #{twice_conv.2} parent=5 // pred_region
      %s123 = ssub.s32 %s10, 1
      // Predicated region
      $region13: #{twice_conv.2} parent=11 // pred_check
        %p124 = pneg %p57
      $region14: #{twice_conv.2} parent=11 // pred_check_branch
        %126 = sbr.rel (%p124) target = $region16
      $region15: #{twice_conv.2} parent=11 // pred_region
        _
      $region16: #{twice_conv.2} parent=11 // pred_fallthru
        _
    $region12: #{twice_conv.2} parent=5 // pred_fallthru
      _
    %p127 = scmp.lt.s32.totalorder %s10, 2
    // Predicated region
    $region17: #{twice_conv.2} parent=5 // pred_check
      %p128 = pneg %p127
    $region18: #{twice_conv.2} parent=5 // pred_check_branch
      %130 = sbr.rel (%p128) target = $region20
    $region19: #{twice_conv.2} parent=5 // pred_region
      // Predicated region
      $region21: #{twice_conv.2} parent=19 // pred_check
        %p131 = pneg %p30
      $region22: #{twice_conv.2} parent=19 // pred_check_branch
        %133 = sbr.rel (%p131) target = $region24
      $region23: #{twice_conv.2} parent=19 // pred_region
        %p134 = scmp.lt.s32.totalorder %s10, 1
        %s135 = scalar_select %p134, %s10, 1
        %s136 = smul.addr %s135, 2
        %s137 = smul.addr %s136, 4
        %s138 = scalar_lea.vmem %s0, %s137
      $region24: #{twice_conv.2} parent=19 // pred_fallthru
        _
    $region20: #{twice_conv.2} parent=5 // pred_fallthru
      _
    %p139 = scmp.le.s32.totalorder 1, %s10
    %p140 = scmp.lt.s32.totalorder %s10, 3
    %p141 = pnand %p139, %p140
    %p142 = pneg %p141
    // Predicated region
    $region25: #{twice_conv.2} parent=5 // pred_check
      _
    $region26: #{twice_conv.2} parent=5 // pred_check_branch
      %144 = sbr.rel (%p141) target = $region28
    $region27: #{twice_conv.2} parent=5 // pred_region
      %s145 = ssub.s32 %s10, 1
      %p146 = scmp.lt.s32.totalorder %s15, 1
      %s147 = scalar_select %p146, %s15, 1
      %s148 = smul.addr %s147, 2
      %s149 = smul.addr %s148, 4
      %s150 = scalar_lea.vmem %s0, %s149
      %p151 = pneg %p36
      %p152 = pneg %p33
      %p153 = pneg %p57
      %p154 = pneg %p54
      %p155 = pneg %p83
      %p156 = pneg %p80
      %p157 = scmp.lt.s32.totalorder %s15, 1
      %s158 = scalar_select %p157, %s15, 1
      %s159 = smul.addr %s158, 2
      %s160 = smul.addr %s159, 4
      %s161 = scalar_lea.vmem %s2, %s160
      %p162 = pneg %p109
      %p163 = pneg %p106
      %p164 = scmp.lt.s32.totalorder %s15, 1
      %s165 = scalar_select %p164, %s15, 1
      %s166 = smul.addr %s165, 2
      %s167 = scalar_lea.vmem %s3, %s166
      %p168 = scmp.lt.s32.totalorder %s15, 1
      %s169 = scalar_select %p168, %s15, 1
      %s170 = smul.addr %s169, 2
      %s171 = smul.addr %s170, 4
      %s172 = scalar_lea.vmem %s0, %s171
      %p173 = scmp.lt.s32.totalorder %s15, 1
      %s174 = scalar_select %p173, %s15, 1
      %s175 = smul.addr %s174, 2
      %s176 = smul.addr %s175, 4
      %s177 = scalar_lea.vmem %s2, %s176
      %p178 = scmp.lt.s32.totalorder %s15, 1
      %s179 = scalar_select %p178, %s15, 1
      %s180 = smul.addr %s179, 2
      %s181 = scalar_lea.vmem %s3, %s180
      %v183 = vld [vmem:[%s172] sm:$0xf]
      %v184 = vld [vmem:[%s172 + $0x4] sm:$0xf]
      %v187 = vunpack.c.l.b16 %v183
      %v188 = vunpack.c.l.b16 %v184
      %v189 = vpack.c.b16 %v188, %v187
      %v191 = vshrl.u32 %v189, 16
      %v193 = vrot.slane %v191, 7
      %v194 = vshll.u32 %v189, 16
      %v196 = vor.u32 %v193, %v194
      %vm198 = vcmask 1040384
      %vm199 = vsmask.f32 256
      %vm200 = vmand %vm198, %vm199
      %v201 = vsel %vm200, 0, %v196
      %v202 = vrot.slane %v194, 1
      %v203 = vor.u32 %v191, %v202
      %vm205 = vcmask 1047552
      %vm206 = vsmask.f32 7424
      %vm207 = vmand %vm205, %vm206
      %v208 = vsel %vm207, %v203, 0
      %v209 = vld [vmem:[%s1] sm:$0xf]
      %v210 = vld [vmem:[%s1 + $0x4] sm:$0xf]
      %v211 = vld [vmem:[%s1 + $0x8] sm:$0xf]
      %v212 = vld [vmem:[%s1 + $0xc] sm:$0xf]
      %v213 = vld [vmem:[%s1 + $0x10] sm:$0xf]
      %v214 = vld [vmem:[%s1 + $0x14] sm:$0xf]
      %v215 = vld [vmem:[%s1 + $0x18] sm:$0xf]
      %v216 = vld [vmem:[%s1 + $0x1c] sm:$0xf]
      %s217 = scalar_lea.vmem %s1, 32
      %v218 = vld [vmem:[%s217] sm:$0xf]
      %v219 = vld [vmem:[%s217 + $0x4] sm:$0xf]
      %v220 = vld [vmem:[%s217 + $0x8] sm:$0xf]
      %v221 = vld [vmem:[%s217 + $0xc] sm:$0xf]
      %v222 = vld [vmem:[%s217 + $0x10] sm:$0xf]
      %v223 = vld [vmem:[%s217 + $0x14] sm:$0xf]
      %v224 = vld [vmem:[%s217 + $0x18] sm:$0xf]
      %v225 = vld [vmem:[%s217 + $0x1c] sm:$0xf]
      %v234 = vunpack.c.l.b16 %v218
      %v235 = vunpack.c.l.b16 %v219
      %v236 = vunpack.c.l.b16 %v220
      %v237 = vunpack.c.l.b16 %v221
      %v238 = vunpack.c.l.b16 %v222
      %v239 = vunpack.c.l.b16 %v223
      %v240 = vunpack.c.l.b16 %v224
      %v241 = vunpack.c.l.b16 %v225
      %v242 = vpack.c.b16 %v235, %v234
      %v243 = vpack.c.b16 %v237, %v236
      %v244 = vpack.c.b16 %v239, %v238
      %v245 = vpack.c.b16 %v241, %v240
      %vm250 = vcmask 523264
      %v251 = vsel %vm250, %v189, 0
      %253 = vmatprep.subr.bf16.mxu0 0
      %254 = vmatpush1.bf16.msra.mxu0 0
      %255 = vmatprep.subr.bf16.mxu0 0
      %256 = vmatpush1.bf16.msra.mxu0 0
      %257 = vmatprep.subr.bf16.mxu0 0
      %258 = vmatpush1.bf16.msra.mxu0 0
      %259 = vmatprep.subr.bf16.mxu0 0
      %260 = vmatpush1.bf16.msra.mxu0 0
      %261 = vmatprep.subr.bf16.mxu0 0
      %262 = vmatpush1.bf16.msra.mxu0 %v245
      %263 = vmatprep.subr.bf16.mxu0 0
      %264 = vmatpush1.bf16.msra.mxu0 %v244
      %265 = vmatprep.subr.bf16.mxu0 0
      %266 = vmatpush1.bf16.msra.mxu0 %v243
      %267 = vmatprep.subr.bf16.mxu0 0
      %268 = vmatpush1.bf16.msra.mxu0 %v242
      %269 = vmatprep.subr.bf16.mxu0 0
      %270 = vmatpush2.bf16.msra.mxu0 0
      %271 = vmatprep.subr.bf16.mxu0 0
      %272 = vmatpush2.bf16.msra.mxu0 0
      %273 = vmatprep.subr.bf16.mxu0 0
      %274 = vmatpush2.bf16.msra.mxu0 0
      %275 = vmatprep.subr.bf16.mxu0 0
      %276 = vmatpush2.bf16.msra.mxu0 0
      %277 = vmatprep.subr.bf16.mxu0 0
      %278 = vmatpush2.bf16.msra.mxu0 0
      %279 = vmatprep.subr.bf16.mxu0 0
      %280 = vmatpush2.bf16.msra.mxu0 0
      %281 = vmatprep.subr.bf16.mxu0 0
      %282 = vmatpush2.bf16.msra.mxu0 0
      %283 = vmatprep.subr.bf16.mxu0 0
      %284 = vmatpush2.bf16.msra.mxu0 0
      %285 = vmatprep.mubr.bf16.mxu0 0
      %286 = vmatmul.mubr.bf16.gmra.mxu0 %v251
      %v287 = vpop.f32.mrf.mxu0
      %v288 = vadd.f32 0.0, %v287
      %v289 = vpop.f32.mrf.mxu0
      %v290 = vpop.f32.mrf.mxu0
      %v291 = vadd.f32 0.0, %v290
      %v292 = vpop.f32.mrf.mxu0
      %293 = vdwg.mxu0
      %v302 = vunpack.c.l.b16 %v209
      %v303 = vunpack.c.l.b16 %v210
      %v304 = vunpack.c.l.b16 %v211
      %v305 = vunpack.c.l.b16 %v212
      %v306 = vunpack.c.l.b16 %v213
      %v307 = vunpack.c.l.b16 %v214
      %v308 = vunpack.c.l.b16 %v215
      %v309 = vunpack.c.l.b16 %v216
      %v310 = vpack.c.b16 %v303, %v302
      %v311 = vpack.c.b16 %v305, %v304
      %v312 = vpack.c.b16 %v307, %v306
      %v313 = vpack.c.b16 %v309, %v308
      %v319 = vsel %vm250, %v201, 0
      %321 = vmatprep.subr.bf16.mxu0 0
      %322 = vmatpush1.bf16.msra.mxu0 0
      %323 = vmatprep.subr.bf16.mxu0 0
      %324 = vmatpush1.bf16.msra.mxu0 0
      %325 = vmatprep.subr.bf16.mxu0 0
      %326 = vmatpush1.bf16.msra.mxu0 0
      %327 = vmatprep.subr.bf16.mxu0 0
      %328 = vmatpush1.bf16.msra.mxu0 0
      %329 = vmatprep.subr.bf16.mxu0 0
      %330 = vmatpush1.bf16.msra.mxu0 %v313
      %331 = vmatprep.subr.bf16.mxu0 0
      %332 = vmatpush1.bf16.msra.mxu0 %v312
      %333 = vmatprep.subr.bf16.mxu0 0
      %334 = vmatpush1.bf16.msra.mxu0 %v311
      %335 = vmatprep.subr.bf16.mxu0 0
      %336 = vmatpush1.bf16.msra.mxu0 %v310
      %337 = vmatprep.subr.bf16.mxu0 0
      %338 = vmatpush2.bf16.msra.mxu0 0
      %339 = vmatprep.subr.bf16.mxu0 0
      %340 = vmatpush2.bf16.msra.mxu0 0
      %341 = vmatprep.subr.bf16.mxu0 0
      %342 = vmatpush2.bf16.msra.mxu0 0
      %343 = vmatprep.subr.bf16.mxu0 0
      %344 = vmatpush2.bf16.msra.mxu0 0
      %345 = vmatprep.subr.bf16.mxu0 0
      %346 = vmatpush2.bf16.msra.mxu0 0
      %347 = vmatprep.subr.bf16.mxu0 0
      %348 = vmatpush2.bf16.msra.mxu0 0
      %349 = vmatprep.subr.bf16.mxu0 0
      %350 = vmatpush2.bf16.msra.mxu0 0
      %351 = vmatprep.subr.bf16.mxu0 0
      %352 = vmatpush2.bf16.msra.mxu0 0
      %353 = vmatprep.mubr.bf16.mxu0 0
      %354 = vmatmul.mubr.bf16.gmra.mxu0 %v319
      %v355 = vpop.f32.mrf.mxu0
      %v356 = vadd.f32 %v288, %v355
      %v357 = vpop.f32.mrf.mxu0
      %v358 = vpop.f32.mrf.mxu0
      %v359 = vadd.f32 %v291, %v358
      %v360 = vpop.f32.mrf.mxu0
      %361 = vdwg.mxu0
      %s362 = scalar_lea.vmem %s1, 64
      %v363 = vld [vmem:[%s362] sm:$0xf]
      %v364 = vld [vmem:[%s362 + $0x4] sm:$0xf]
      %v365 = vld [vmem:[%s362 + $0x8] sm:$0xf]
      %v366 = vld [vmem:[%s362 + $0xc] sm:$0xf]
      %v367 = vld [vmem:[%s362 + $0x10] sm:$0xf]
      %v368 = vld [vmem:[%s362 + $0x14] sm:$0xf]
      %v369 = vld [vmem:[%s362 + $0x18] sm:$0xf]
      %v370 = vld [vmem:[%s362 + $0x1c] sm:$0xf]
      %v379 = vunpack.c.l.b16 %v363
      %v380 = vunpack.c.l.b16 %v364
      %v381 = vunpack.c.l.b16 %v365
      %v382 = vunpack.c.l.b16 %v366
      %v383 = vunpack.c.l.b16 %v367
      %v384 = vunpack.c.l.b16 %v368
      %v385 = vunpack.c.l.b16 %v369
      %v386 = vunpack.c.l.b16 %v370
      %v387 = vpack.c.b16 %v380, %v379
      %v388 = vpack.c.b16 %v382, %v381
      %v389 = vpack.c.b16 %v384, %v383
      %v390 = vpack.c.b16 %v386, %v385
      %v396 = vsel %vm250, %v208, 0
      %398 = vmatprep.subr.bf16.mxu0 0
      %399 = vmatpush1.bf16.msra.mxu0 0
      %400 = vmatprep.subr.bf16.mxu0 0
      %401 = vmatpush1.bf16.msra.mxu0 0
      %402 = vmatprep.subr.bf16.mxu0 0
      %403 = vmatpush1.bf16.msra.mxu0 0
      %404 = vmatprep.subr.bf16.mxu0 0
      %405 = vmatpush1.bf16.msra.mxu0 0
      %406 = vmatprep.subr.bf16.mxu0 0
      %407 = vmatpush1.bf16.msra.mxu0 %v390
      %408 = vmatprep.subr.bf16.mxu0 0
      %409 = vmatpush1.bf16.msra.mxu0 %v389
      %410 = vmatprep.subr.bf16.mxu0 0
      %411 = vmatpush1.bf16.msra.mxu0 %v388
      %412 = vmatprep.subr.bf16.mxu0 0
      %413 = vmatpush1.bf16.msra.mxu0 %v387
      %414 = vmatprep.subr.bf16.mxu0 0
      %415 = vmatpush2.bf16.msra.mxu0 0
      %416 = vmatprep.subr.bf16.mxu0 0
      %417 = vmatpush2.bf16.msra.mxu0 0
      %418 = vmatprep.subr.bf16.mxu0 0
      %419 = vmatpush2.bf16.msra.mxu0 0
      %420 = vmatprep.subr.bf16.mxu0 0
      %421 = vmatpush2.bf16.msra.mxu0 0
      %422 = vmatprep.subr.bf16.mxu0 0
      %423 = vmatpush2.bf16.msra.mxu0 0
      %424 = vmatprep.subr.bf16.mxu0 0
      %425 = vmatpush2.bf16.msra.mxu0 0
      %426 = vmatprep.subr.bf16.mxu0 0
      %427 = vmatpush2.bf16.msra.mxu0 0
      %428 = vmatprep.subr.bf16.mxu0 0
      %429 = vmatpush2.bf16.msra.mxu0 0
      %430 = vmatprep.mubr.bf16.mxu0 0
      %431 = vmatmul.mubr.bf16.gmra.mxu0 %v396
      %v432 = vpop.f32.mrf.mxu0
      %v433 = vadd.f32 0.0, %v432
      %v434 = vpop.f32.mrf.mxu0
      %v435 = vpop.f32.mrf.mxu0
      %v436 = vadd.f32 0.0, %v435
      %v437 = vpop.f32.mrf.mxu0
      %438 = vdwg.mxu0
      %v439 = vadd.f32 %v356, %v433
      %v440 = vadd.f32 %v359, %v436
      %v441 = vpack.c.bf16 %v440, %v439
      %v443 = vunpack.c.l.b16 %v441
      %v444 = vunpack.c.h.b16 %v441
      %v445 = vpack.c.b16 %v443, %v443
      %v446 = vpack.c.b16 %v444, %v444
      %449 = vst [vmem:[%s177] sm:$0xf] %v445
      %450 = vst [vmem:[%s177 + $0x4] sm:$0xf] %v446
      %v451 = vadd.f32 %v439, %v440
      %v452 = vrot.slane %v451, 4
      %v453 = vadd.f32 %v451, %v452
      %v454 = vrot.slane %v453, 2
      %v455 = vadd.f32 %v453, %v454
      %v456 = vrot.slane %v455, 1
      %v457 = vadd.f32 %v455, %v456
      %v458 = vmul.f32 %v439, %v439
      %v459 = vmul.f32 %v440, %v440
      %v460 = vadd.f32 %v458, %v459
      %v461 = vrot.slane %v460, 4
      %v462 = vadd.f32 %v460, %v461
      %v463 = vrot.slane %v462, 2
      %v464 = vadd.f32 %v462, %v463
      %v465 = vrot.slane %v464, 1
      %v466 = vadd.f32 %v464, %v465
      %v467 = vlaneseq
      %v468 = vshrl.u32 %v467, 7
      %v469 = vadd.s32 %v468, 8
      %v470 = vadd.s32 %v468, 16
      %v471 = vadd.s32 %v468, 24
      %v472 = vadd.s32 %v468, 32
      %v473 = vadd.s32 %v468, 40
      %v474 = vadd.s32 %v468, 48
      %v475 = vadd.s32 %v468, 56
      %v476 = vadd.s32 %v468, 64
      %v477 = vadd.s32 %v468, 72
      %v478 = vadd.s32 %v468, 80
      %v479 = vadd.s32 %v468, 88
      %v480 = vadd.s32 %v468, 96
      %v481 = vadd.s32 %v468, 104
      %v482 = vadd.s32 %v468, 112
      %v483 = vadd.s32 %v468, 120
      %vm484 = vcmp.lt.s32.totalorder %v468, 0
      %v485 = vsub.s32 0, %v468
      %v486 = vsel %vm484, %v485, %v468
      %v487 = vshrl.u32 %v486, 3
      %v488 = vand.u32 %v486, 7
      %v489 = vsub.s32 0, %v488
      %v490 = vsel %vm484, %v489, %v488
      %vm491 = vcmp.lt.s32.totalorder %v469, 0
      %v492 = vsub.s32 0, %v469
      %v493 = vsel %vm491, %v492, %v469
      %v494 = vshrl.u32 %v493, 3
      %v495 = vand.u32 %v493, 7
      %v496 = vsub.s32 0, %v495
      %v497 = vsel %vm491, %v496, %v495
      %vm498 = vcmp.lt.s32.totalorder %v470, 0
      %v499 = vsub.s32 0, %v470
      %v500 = vsel %vm498, %v499, %v470
      %v501 = vshrl.u32 %v500, 3
      %v502 = vand.u32 %v500, 7
      %v503 = vsub.s32 0, %v502
      %v504 = vsel %vm498, %v503, %v502
      %vm505 = vcmp.lt.s32.totalorder %v471, 0
      %v506 = vsub.s32 0, %v471
      %v507 = vsel %vm505, %v506, %v471
      %v508 = vshrl.u32 %v507, 3
      %v509 = vand.u32 %v507, 7
      %v510 = vsub.s32 0, %v509
      %v511 = vsel %vm505, %v510, %v509
      %vm512 = vcmp.lt.s32.totalorder %v472, 0
      %v513 = vsub.s32 0, %v472
      %v514 = vsel %vm512, %v513, %v472
      %v515 = vshrl.u32 %v514, 3
      %v516 = vand.u32 %v514, 7
      %v517 = vsub.s32 0, %v516
      %v518 = vsel %vm512, %v517, %v516
      %vm519 = vcmp.lt.s32.totalorder %v473, 0
      %v520 = vsub.s32 0, %v473
      %v521 = vsel %vm519, %v520, %v473
      %v522 = vshrl.u32 %v521, 3
      %v523 = vand.u32 %v521, 7
      %v524 = vsub.s32 0, %v523
      %v525 = vsel %vm519, %v524, %v523
      %vm526 = vcmp.lt.s32.totalorder %v474, 0
      %v527 = vsub.s32 0, %v474
      %v528 = vsel %vm526, %v527, %v474
      %v529 = vshrl.u32 %v528, 3
      %v530 = vand.u32 %v528, 7
      %v531 = vsub.s32 0, %v530
      %v532 = vsel %vm526, %v531, %v530
      %vm533 = vcmp.lt.s32.totalorder %v475, 0
      %v534 = vsub.s32 0, %v475
      %v535 = vsel %vm533, %v534, %v475
      %v536 = vshrl.u32 %v535, 3
      %v537 = vand.u32 %v535, 7
      %v538 = vsub.s32 0, %v537
      %v539 = vsel %vm533, %v538, %v537
      %vm540 = vcmp.lt.s32.totalorder %v476, 0
      %v541 = vsub.s32 0, %v476
      %v542 = vsel %vm540, %v541, %v476
      %v543 = vshrl.u32 %v542, 3
      %v544 = vand.u32 %v542, 7
      %v545 = vsub.s32 0, %v544
      %v546 = vsel %vm540, %v545, %v544
      %vm547 = vcmp.lt.s32.totalorder %v477, 0
      %v548 = vsub.s32 0, %v477
      %v549 = vsel %vm547, %v548, %v477
      %v550 = vshrl.u32 %v549, 3
      %v551 = vand.u32 %v549, 7
      %v552 = vsub.s32 0, %v551
      %v553 = vsel %vm547, %v552, %v551
      %vm554 = vcmp.lt.s32.totalorder %v478, 0
      %v555 = vsub.s32 0, %v478
      %v556 = vsel %vm554, %v555, %v478
      %v557 = vshrl.u32 %v556, 3
      %v558 = vand.u32 %v556, 7
      %v559 = vsub.s32 0, %v558
      %v560 = vsel %vm554, %v559, %v558
      %vm561 = vcmp.lt.s32.totalorder %v479, 0
      %v562 = vsub.s32 0, %v479
      %v563 = vsel %vm561, %v562, %v479
      %v564 = vshrl.u32 %v563, 3
      %v565 = vand.u32 %v563, 7
      %v566 = vsub.s32 0, %v565
      %v567 = vsel %vm561, %v566, %v565
      %vm568 = vcmp.lt.s32.totalorder %v480, 0
      %v569 = vsub.s32 0, %v480
      %v570 = vsel %vm568, %v569, %v480
      %v571 = vshrl.u32 %v570, 3
      %v572 = vand.u32 %v570, 7
      %v573 = vsub.s32 0, %v572
      %v574 = vsel %vm568, %v573, %v572
      %vm575 = vcmp.lt.s32.totalorder %v481, 0
      %v576 = vsub.s32 0, %v481
      %v577 = vsel %vm575, %v576, %v481
      %v578 = vshrl.u32 %v577, 3
      %v579 = vand.u32 %v577, 7
      %v580 = vsub.s32 0, %v579
      %v581 = vsel %vm575, %v580, %v579
      %vm582 = vcmp.lt.s32.totalorder %v482, 0
      %v583 = vsub.s32 0, %v482
      %v584 = vsel %vm582, %v583, %v482
      %v585 = vshrl.u32 %v584, 3
      %v586 = vand.u32 %v584, 7
      %v587 = vsub.s32 0, %v586
      %v588 = vsel %vm582, %v587, %v586
      %vm589 = vcmp.lt.s32.totalorder %v483, 0
      %v590 = vsub.s32 0, %v483
      %v591 = vsel %vm589, %v590, %v483
      %v592 = vshrl.u32 %v591, 3
      %v593 = vand.u32 %v591, 7
      %v594 = vsub.s32 0, %v593
      %v595 = vsel %vm589, %v594, %v593
      %vm596 = vcmp.ne.s32.totalorder %v490, 0
      %vm597 = vcmp.ne.s32.totalorder %v497, 0
      %vm598 = vcmp.ne.s32.totalorder %v504, 0
      %vm599 = vcmp.ne.s32.totalorder %v511, 0
      %vm600 = vcmp.ne.s32.totalorder %v518, 0
      %vm601 = vcmp.ne.s32.totalorder %v525, 0
      %vm602 = vcmp.ne.s32.totalorder %v532, 0
      %vm603 = vcmp.ne.s32.totalorder %v539, 0
      %vm604 = vcmp.ne.s32.totalorder %v546, 0
      %vm605 = vcmp.ne.s32.totalorder %v553, 0
      %vm606 = vcmp.ne.s32.totalorder %v560, 0
      %vm607 = vcmp.ne.s32.totalorder %v567, 0
      %vm608 = vcmp.ne.s32.totalorder %v574, 0
      %vm609 = vcmp.ne.s32.totalorder %v581, 0
      %vm610 = vcmp.ne.s32.totalorder %v588, 0
      %vm611 = vcmp.ne.s32.totalorder %v595, 0
      %vm612 = vcmp.lt.s32.totalorder %v490, 0
      %vm613 = vcmp.lt.s32.totalorder %v497, 0
      %vm614 = vcmp.lt.s32.totalorder %v504, 0
      %vm615 = vcmp.lt.s32.totalorder %v511, 0
      %vm616 = vcmp.lt.s32.totalorder %v518, 0
      %vm617 = vcmp.lt.s32.totalorder %v525, 0
      %vm618 = vcmp.lt.s32.totalorder %v532, 0
      %vm619 = vcmp.lt.s32.totalorder %v539, 0
      %vm620 = vcmp.lt.s32.totalorder %v546, 0
      %vm621 = vcmp.lt.s32.totalorder %v553, 0
      %vm622 = vcmp.lt.s32.totalorder %v560, 0
      %vm623 = vcmp.lt.s32.totalorder %v567, 0
      %vm624 = vcmp.lt.s32.totalorder %v574, 0
      %vm625 = vcmp.lt.s32.totalorder %v581, 0
      %vm626 = vcmp.lt.s32.totalorder %v588, 0
      %vm627 = vcmp.lt.s32.totalorder %v595, 0
      %vm628 = vmand %vm612, %vm596
      %vm629 = vmand %vm613, %vm597
      %vm630 = vmand %vm614, %vm598
      %vm631 = vmand %vm615, %vm599
      %vm632 = vmand %vm616, %vm600
      %vm633 = vmand %vm617, %vm601
      %vm634 = vmand %vm618, %vm602
      %vm635 = vmand %vm619, %vm603
      %vm636 = vmand %vm620, %vm604
      %vm637 = vmand %vm621, %vm605
      %vm638 = vmand %vm622, %vm606
      %vm639 = vmand %vm623, %vm607
      %vm640 = vmand %vm624, %vm608
      %vm641 = vmand %vm625, %vm609
      %vm642 = vmand %vm626, %vm610
      %vm643 = vmand %vm627, %vm611
      %v644 = vadd.s32 %v490, 8
      %v645 = vadd.s32 %v497, 8
      %v646 = vadd.s32 %v504, 8
      %v647 = vadd.s32 %v511, 8
      %v648 = vadd.s32 %v518, 8
      %v649 = vadd.s32 %v525, 8
      %v650 = vadd.s32 %v532, 8
      %v651 = vadd.s32 %v539, 8
      %v652 = vadd.s32 %v546, 8
      %v653 = vadd.s32 %v553, 8
      %v654 = vadd.s32 %v560, 8
      %v655 = vadd.s32 %v567, 8
      %v656 = vadd.s32 %v574, 8
      %v657 = vadd.s32 %v581, 8
      %v658 = vadd.s32 %v588, 8
      %v659 = vadd.s32 %v595, 8
      %v660 = vsel %vm628, %v644, %v490
      %v661 = vsel %vm629, %v645, %v497
      %v662 = vsel %vm630, %v646, %v504
      %v663 = vsel %vm631, %v647, %v511
      %v664 = vsel %vm632, %v648, %v518
      %v665 = vsel %vm633, %v649, %v525
      %v666 = vsel %vm634, %v650, %v532
      %v667 = vsel %vm635, %v651, %v539
      %v668 = vsel %vm636, %v652, %v546
      %v669 = vsel %vm637, %v653, %v553
      %v670 = vsel %vm638, %v654, %v560
      %v671 = vsel %vm639, %v655, %v567
      %v672 = vsel %vm640, %v656, %v574
      %v673 = vsel %vm641, %v657, %v581
      %v674 = vsel %vm642, %v658, %v588
      %v675 = vsel %vm643, %v659, %v595
      %v676 = vlaneseq
      %v677 = vand.u32 %v676, 127
      %vm678 = vcmp.eq.s32.totalorder %v660, %v677
      %vm679 = vcmp.eq.s32.totalorder %v661, %v677
      %vm680 = vcmp.eq.s32.totalorder %v662, %v677
      %vm681 = vcmp.eq.s32.totalorder %v663, %v677
      %vm682 = vcmp.eq.s32.totalorder %v664, %v677
      %vm683 = vcmp.eq.s32.totalorder %v665, %v677
      %vm684 = vcmp.eq.s32.totalorder %v666, %v677
      %vm685 = vcmp.eq.s32.totalorder %v667, %v677
      %vm686 = vcmp.eq.s32.totalorder %v668, %v677
      %vm687 = vcmp.eq.s32.totalorder %v669, %v677
      %vm688 = vcmp.eq.s32.totalorder %v670, %v677
      %vm689 = vcmp.eq.s32.totalorder %v671, %v677
      %vm690 = vcmp.eq.s32.totalorder %v672, %v677
      %vm691 = vcmp.eq.s32.totalorder %v673, %v677
      %vm692 = vcmp.eq.s32.totalorder %v674, %v677
      %vm693 = vcmp.eq.s32.totalorder %v675, %v677
      %v694 = vsel %vm678, 1, 0
      %v695 = vsel %vm679, 1, 0
      %v696 = vsel %vm680, 1, 0
      %v697 = vsel %vm681, 1, 0
      %v698 = vsel %vm682, 1, 0
      %v699 = vsel %vm683, 1, 0
      %v700 = vsel %vm684, 1, 0
      %v701 = vsel %vm685, 1, 0
      %v702 = vsel %vm686, 1, 0
      %v703 = vsel %vm687, 1, 0
      %v704 = vsel %vm688, 1, 0
      %v705 = vsel %vm689, 1, 0
      %v706 = vsel %vm690, 1, 0
      %v707 = vsel %vm691, 1, 0
      %v708 = vsel %vm692, 1, 0
      %v709 = vsel %vm693, 1, 0
      %v710 = vcvt.s32.f32 %v694
      %v711 = vcvt.s32.f32 %v695
      %v712 = vcvt.s32.f32 %v696
      %v713 = vcvt.s32.f32 %v697
      %v714 = vcvt.s32.f32 %v698
      %v715 = vcvt.s32.f32 %v699
      %v716 = vcvt.s32.f32 %v700
      %v717 = vcvt.s32.f32 %v701
      %v718 = vcvt.s32.f32 %v702
      %v719 = vcvt.s32.f32 %v703
      %v720 = vcvt.s32.f32 %v704
      %v721 = vcvt.s32.f32 %v705
      %v722 = vcvt.s32.f32 %v706
      %v723 = vcvt.s32.f32 %v707
      %v724 = vcvt.s32.f32 %v708
      %v725 = vcvt.s32.f32 %v709
      %vm726 = vcmask 1040384
      %v727 = vsel %vm726, %v457, %v466
      %728 = vmatprep.subr.mxu0 0.0
      %729 = vmatpush1.msra.mxu0 %v725
      %730 = vmatprep.subr.mxu0 0.0
      %731 = vmatpush1.msra.mxu0 %v724
      %732 = vmatprep.subr.mxu0 0.0
      %733 = vmatpush1.msra.mxu0 %v723
      %734 = vmatprep.subr.mxu0 0.0
      %735 = vmatpush1.msra.mxu0 %v722
      %736 = vmatprep.subr.mxu0 0.0
      %737 = vmatpush1.msra.mxu0 %v721
      %738 = vmatprep.subr.mxu0 0.0
      %739 = vmatpush1.msra.mxu0 %v720
      %740 = vmatprep.subr.mxu0 0.0
      %741 = vmatpush1.msra.mxu0 %v719
      %742 = vmatprep.subr.mxu0 0.0
      %743 = vmatpush1.msra.mxu0 %v718
      %744 = vmatprep.subr.mxu0 0.0
      %745 = vmatpush1.msra.mxu0 %v717
      %746 = vmatprep.subr.mxu0 0.0
      %747 = vmatpush1.msra.mxu0 %v716
      %748 = vmatprep.subr.mxu0 0.0
      %749 = vmatpush1.msra.mxu0 %v715
      %750 = vmatprep.subr.mxu0 0.0
      %751 = vmatpush1.msra.mxu0 %v714
      %752 = vmatprep.subr.mxu0 0.0
      %753 = vmatpush1.msra.mxu0 %v713
      %754 = vmatprep.subr.mxu0 0.0
      %755 = vmatpush1.msra.mxu0 %v712
      %756 = vmatprep.subr.mxu0 0.0
      %757 = vmatpush1.msra.mxu0 %v711
      %758 = vmatprep.subr.mxu0 0.0
      %759 = vmatpush1.msra.mxu0 %v710
      %760 = vmatprep.subr.mxu0 0.0
      %761 = vmatpush2.msra.mxu0 0.0
      %762 = vmatprep.subr.mxu0 0.0
      %763 = vmatpush2.msra.mxu0 0.0
      %764 = vmatprep.subr.mxu0 0.0
      %765 = vmatpush2.msra.mxu0 0.0
      %766 = vmatprep.subr.mxu0 0.0
      %767 = vmatpush2.msra.mxu0 0.0
      %768 = vmatprep.subr.mxu0 0.0
      %769 = vmatpush2.msra.mxu0 0.0
      %770 = vmatprep.subr.mxu0 0.0
      %771 = vmatpush2.msra.mxu0 0.0
      %772 = vmatprep.subr.mxu0 0.0
      %773 = vmatpush2.msra.mxu0 0.0
      %774 = vmatprep.subr.mxu0 0.0
      %775 = vmatpush2.msra.mxu0 0.0
      %776 = vmatprep.subr.mxu0 0.0
      %777 = vmatpush2.msra.mxu0 0.0
      %778 = vmatprep.subr.mxu0 0.0
      %779 = vmatpush2.msra.mxu0 0.0
      %780 = vmatprep.subr.mxu0 0.0
      %781 = vmatpush2.msra.mxu0 0.0
      %782 = vmatprep.subr.mxu0 0.0
      %783 = vmatpush2.msra.mxu0 0.0
      %784 = vmatprep.subr.mxu0 0.0
      %785 = vmatpush2.msra.mxu0 0.0
      %786 = vmatprep.subr.mxu0 0.0
      %787 = vmatpush2.msra.mxu0 0.0
      %788 = vmatprep.subr.mxu0 0.0
      %789 = vmatpush2.msra.mxu0 0.0
      %790 = vmatprep.subr.mxu0 0.0
      %791 = vmatpush2.msra.mxu0 0.0
      %792 = vmatprep.mubr.f32.mxu0 0.0
      %793 = vmatmul.mubr.f32.gmra.mxu0 %v727
      %v794 = vpop.f32.mrf.mxu0
      %v795 = vadd.f32 0.0, %v794
      %v796 = vpop.f32.mrf.mxu0
      %797 = vdwg.mxu0
      %vm798 = vcmask 58368
      %799 = vst.msk [vmem:[%s181] sm:$0x3] %vm798, %v795
      %p800 = scmp.lt.s32.totalorder %s15, 1
      %s801 = scalar_select %p800, %s15, 1
      %s802 = smul.addr %s801, 2
      %s803 = smul.addr %s802, 4
      %s804 = scalar_lea.vmem %s2, %s803
      %p805 = scmp.lt.s32.totalorder %s15, 1
      %s806 = scalar_select %p805, %s15, 1
      %s807 = smul.addr %s806, 2
      %s808 = scalar_lea.vmem %s3, %s807
      // Predicated region
      $region29: #{twice_conv.2} parent=27 // pred_check
        %p809 = pneg %p80
      $region30: #{twice_conv.2} parent=27 // pred_check_branch
        %811 = sbr.rel (%p809) target = $region32
      $region31: #{twice_conv.2} parent=27 // pred_region
        _
      $region32: #{twice_conv.2} parent=27 // pred_fallthru
        _
      // Predicated region
      $region33: #{twice_conv.2} parent=27 // pred_check
        %p812 = pneg %p106
      $region34: #{twice_conv.2} parent=27 // pred_check_branch
        %814 = sbr.rel (%p812) target = $region36
      $region35: #{twice_conv.2} parent=27 // pred_region
        _
      $region36: #{twice_conv.2} parent=27 // pred_fallthru
        _
    $region28: #{twice_conv.2} parent=5 // pred_fallthru
      _
    %p815 = scmp.le.s32.totalorder 2, %s10
    // Predicated region
    $region37: #{twice_conv.2} parent=5 // pred_check
      %p816 = pneg %p815
    $region38: #{twice_conv.2} parent=5 // pred_check_branch
      %818 = sbr.rel (%p816) target = $region40
    $region39: #{twice_conv.2} parent=5 // pred_region
      %s819 = ssub.s32 %s10, 2
      // Predicated region
      $region41: #{twice_conv.2} parent=39 // pred_check
        %p820 = pneg %p86
      $region42: #{twice_conv.2} parent=39 // pred_check_branch
        %822 = sbr.rel (%p820) target = $region44
      $region43: #{twice_conv.2} parent=39 // pred_region
        %p823 = scmp.lt.s32.totalorder %s16, 1
        %s824 = scalar_select %p823, %s16, 1
        %s825 = smul.addr %s824, 2
        %s826 = smul.addr %s825, 4
        %s827 = scalar_lea.vmem %s2, %s826
      $region44: #{twice_conv.2} parent=39 // pred_fallthru
        _
      // Predicated region
      $region45: #{twice_conv.2} parent=39 // pred_check
        %p828 = pneg %p112
      $region46: #{twice_conv.2} parent=39 // pred_check_branch
        %830 = sbr.rel (%p828) target = $region48
      $region47: #{twice_conv.2} parent=39 // pred_region
        %p831 = scmp.lt.s32.totalorder %s16, 1
        %s832 = scalar_select %p831, %s16, 1
        %s833 = smul.addr %s832, 2
        %s834 = scalar_lea.vmem %s3, %s833
      $region48: #{twice_conv.2} parent=39 // pred_fallthru
        _
    $region40: #{twice_conv.2} parent=5 // pred_fallthru
      _
  $region6: #{twice_conv.2} parent=0 // loop_footer
    %s14 = sadd.s32 1, %s10
  $region7: #{twice_conv.2} parent=0 // loop_footer_branch
    %9 = sbr.rel target = $region3
  $region8: #{twice_conv.2} parent=0 // loop_exit
    _

// kernel: tile.18
$region0: #{tile.18}
  #allocation0 [shape = 's32[1]{0}', space=sflag, size = 0x4, scoped, tag = 'scoped memory for tile.18']
  %s0 = inlined_call_operand.vmem [shape: f32[8], index: 0, kind: input, shape index: {}]
  %s1 = inlined_call_operand.vmem [shape: f32[16,8], index: 1, kind: output, shape index: {}]
  // Predicated region
  $region2: #{tile.18} parent=0 // pred_check
    _
  $region3: #{tile.18} parent=0 // pred_check_branch
    %3 = sbr.rel (0) target = $region5
  $region4: #{tile.18} parent=0 // pred_region
    _
  $region5: #{tile.18} parent=0 // pred_fallthru
    _
  %v4 = vld [vmem:[%s0] ss:$0 sm:$0xff]
  %5 = vst [vmem:[%s1] sm:$0xff] %v4
  %s6 = scalar_lea.vmem %s1, 8
  %7 = vst [vmem:[%s6] sm:$0xff] %v4

// kernel: tile.19
$region0: #{tile.19}
  %s0 = inlined_call_operand.vmem [shape: f32[16,8], index: 0, kind: input, shape index: {}]
  %s1 = inlined_call_operand.vmem [shape: f32[1,128], index: 1, kind: output, shape index: {}]
  $region1: #{tile.19} parent=0
    #allocation0 [shape = 'u8[4096]{0}', space=vmem, size = 0x1000, scoped, tag = 'scoped mem for output reshape']
    %v2 = vld [vmem:[%s0] sm:$0x1]
    %vm3 = vcmask 64512
    %4 = vst.msk [vmem:[#allocation0] sm:$0x1] %vm3, %v2
    %s5 = scalar_lea.vmem %s0, 15
    %v6 = vld [vmem:[%s5] sm:$0x1]
    %7 = vrot.lane.b32.xlu0 %v6, 120
    %v8 = vpop.permute.xlu0 %7
    %vm9 = vcmask 1048512
    %10 = vst.msk [vmem:[#allocation0] sm:$0x1] %vm9, %v8
    %s11 = scalar_lea.vmem %s0, 14
    %v12 = vld [vmem:[%s11] sm:$0x1]
    %13 = vrot.lane.b32.xlu0 %v12, 112
    %v14 = vpop.permute.xlu0 %13
    %vm15 = vcmask 982912
    %16 = vst.msk [vmem:[#allocation0] sm:$0x1] %vm15, %v14
    %s17 = scalar_lea.vmem %s0, 13
    %v18 = vld [vmem:[%s17] sm:$0x1]
    %19 = vrot.lane.b32.xlu0 %v18, 104
    %v20 = vpop.permute.xlu0 %19
    %vm21 = vcmask 917312
    %22 = vst.msk [vmem:[#allocation0] sm:$0x1] %vm21, %v20
    %s23 = scalar_lea.vmem %s0, 12
    %v24 = vld [vmem:[%s23] sm:$0x1]
    %25 = vrot.lane.b32.xlu0 %v24, 96
    %v26 = vpop.permute.xlu0 %25
    %vm27 = vcmask 851712
    %28 = vst.msk [vmem:[#allocation0] sm:$0x1] %vm27, %v26
    %s29 = scalar_lea.vmem %s0, 11
    %v30 = vld [vmem:[%s29] sm:$0x1]
    %31 = vrot.lane.b32.xlu0 %v30, 88
    %v32 = vpop.permute.xlu0 %31
    %vm33 = vcmask 786112
    %34 = vst.msk [vmem:[#allocation0] sm:$0x1] %vm33, %v32
    %s35 = scalar_lea.vmem %s0, 10
    %v36 = vld [vmem:[%s35] sm:$0x1]
    %37 = vrot.lane.b32.xlu0 %v36, 80
    %v38 = vpop.permute.xlu0 %37
    %vm39 = vcmask 720512
    %40 = vst.msk [vmem:[#allocation0] sm:$0x1] %vm39, %v38
    %s41 = scalar_lea.vmem %s0, 9
    %v42 = vld [vmem:[%s41] sm:$0x1]
    %43 = vrot.lane.b32.xlu0 %v42, 72
    %v44 = vpop.permute.xlu0 %43
    %vm45 = vcmask 654912
    %46 = vst.msk [vmem:[#allocation0] sm:$0x1] %vm45, %v44
    %s47 = scalar_lea.vmem %s0, 8
    %v48 = vld [vmem:[%s47] sm:$0x1]
    %49 = vrot.lane.b32.xlu0 %v48, 64
    %v50 = vpop.permute.xlu0 %49
    %vm51 = vcmask 589312
    %52 = vst.msk [vmem:[#allocation0] sm:$0x1] %vm51, %v50
    %s53 = scalar_lea.vmem %s0, 7
    %v54 = vld [vmem:[%s53] sm:$0x1]
    %55 = vrot.lane.b32.xlu0 %v54, 56
    %v56 = vpop.permute.xlu0 %55
    %vm57 = vcmask 523712
    %58 = vst.msk [vmem:[#allocation0] sm:$0x1] %vm57, %v56
    %s59 = scalar_lea.vmem %s0, 6
    %v60 = vld [vmem:[%s59] sm:$0x1]
    %61 = vrot.lane.b32.xlu0 %v60, 48
    %v62 = vpop.permute.xlu0 %61
    %vm63 = vcmask 458112
    %64 = vst.msk [vmem:[#allocation0] sm:$0x1] %vm63, %v62
    %s65 = scalar_lea.vmem %s0, 5
    %v66 = vld [vmem:[%s65] sm:$0x1]
    %67 = vrot.lane.b32.xlu0 %v66, 40
    %v68 = vpop.permute.xlu0 %67
    %vm69 = vcmask 392512
    %70 = vst.msk [vmem:[#allocation0] sm:$0x1] %vm69, %v68
    %s71 = scalar_lea.vmem %s0, 4
    %v72 = vld [vmem:[%s71] sm:$0x1]
    %73 = vrot.lane.b32.xlu0 %v72, 32
    %v74 = vpop.permute.xlu0 %73
    %vm75 = vcmask 326912
    %76 = vst.msk [vmem:[#allocation0] sm:$0x1] %vm75, %v74
    %s77 = scalar_lea.vmem %s0, 3
    %v78 = vld [vmem:[%s77] sm:$0x1]
    %79 = vrot.lane.b32.xlu0 %v78, 24
    %v80 = vpop.permute.xlu0 %79
    %vm81 = vcmask 261312
    %82 = vst.msk [vmem:[#allocation0] sm:$0x1] %vm81, %v80
    %s83 = scalar_lea.vmem %s0, 2
    %v84 = vld [vmem:[%s83] sm:$0x1]
    %85 = vrot.lane.b32.xlu0 %v84, 16
    %v86 = vpop.permute.xlu0 %85
    %vm87 = vcmask 195712
    %88 = vst.msk [vmem:[#allocation0] sm:$0x1] %vm87, %v86
    %s89 = scalar_lea.vmem %s0, 1
    %v90 = vld [vmem:[%s89] sm:$0x1]
    %91 = vrot.lane.b32.xlu0 %v90, 8
    %v92 = vpop.permute.xlu0 %91
    %vm93 = vcmask 130112
    %94 = vst.msk [vmem:[#allocation0] sm:$0x1] %vm93, %v92
    %s96 = sshll.u32 1, 1
    %s97 = ssub.s32 %s96, 1
    %v99 = vld [vmem:[#allocation0] sm:%s97]
    %s100 = sshll.u32 1, 1
    %s101 = ssub.s32 %s100, 1
    %102 = vst [vmem:[%s1] sm:%s101] %v99

// kernel: twice_conv.3
$region0: #{twice_conv.3}
  #allocation0 [shape = 'u32[]', space=smem, size = 0x4, offset = 0x4, fixed_abs, tag = 'smem constant byte address 0x4 - core index']
  #allocation1 [shape = 'u32[144,128]{1,0:T(1,128)}', space=vmem, size = 0x12000, scoped, tag = 'internal scratch']
  %s0 = inlined_call_operand.vmem [shape: bf16[2,16,128], index: 0, kind: input, shape index: {}]
  %s1 = inlined_call_operand.vmem [shape: f32[1,128], index: 1, kind: input, shape index: {}]
  %s2 = inlined_call_operand.vmem [shape: f32[1,128], index: 2, kind: input, shape index: {}]
  %s3 = inlined_call_operand.vmem [shape: bf16[3,128,128], index: 3, kind: input, shape index: {}]
  %s4 = inlined_call_operand.vmem [shape: f32[2,16,128], index: 4, kind: output, shape index: {}]
  %s5 = sld [smem:[#allocation0]]
  $region49: #{twice_conv.3} parent=0
    _
  %s7 = ssub.s32 1, %s5
  %s8 = scalar_select 0, %s7, %s5
  loop: start=0, step=1, limit=4
  $region2: #{twice_conv.3} parent=0 // loop_pre_header
    _
  $region3: #{twice_conv.3} parent=0 // loop_header
    %s10 = sphi 0, %s14
    %p11 = scmp.ge.s32.totalorder %s10, 4
    %s20 = sphi 0, %s22
    %s23 = sphi 0, %s20
    %s24 = sphi 0, %s23
    %s40 = sphi 0, %s24
    %s44 = sphi 0, %s44
    %s46 = sphi 0, %s44
    %s47 = sphi 0, %s46
    %s61 = sphi 0, %s47
    %s65 = sphi 0, %s65
    %s67 = sphi 0, %s65
    %s68 = sphi 0, %s67
    %s82 = sphi 0, %s68
    %s86 = sphi 0, %s86
    %s88 = sphi 0, %s86
    %s89 = sphi 0, %s88
    %s103 = sphi 0, %s89
    %s109 = sphi 0, %s111
    %s112 = sphi 0, %s109
    %s113 = sphi 0, %s112
    %s129 = sphi 0, %s113
  $region4: #{twice_conv.3} parent=0 // loop_header_branch
    %13 = sbr.rel (%p11) target = $region8
  $region5: #{twice_conv.3} parent=0 // loop_body
    %s15 = ssub.s32 %s10, 1
    %s16 = ssub.s32 %s10, 2
    %s17 = sadd.s32 %s10, 1
    %s18 = ssub.s32 %s10, %s17
    %p19 = scmp.eq.s32.totalorder %s18, 0
    %s21 = sadd.s32 %s20, 1
    %s22 = scalar_select %p19, %s20, %s21
    %p25 = pneg %p19
    %p26 = scmp.eq.s32.totalorder %s10, 1
    %p27 = por %p25, %p26
    %p28 = scmp.ne.s32.totalorder %s20, %s23
    %p29 = scmp.eq.s32.totalorder %s10, 0
    %p30 = por %p28, %p29
    %p31 = scmp.ne.s32.totalorder %s20, %s23
    %p32 = scmp.eq.s32.totalorder %s15, 1
    %p33 = por %p31, %p32
    %p34 = scmp.ne.s32.totalorder %s23, %s24
    %p35 = scmp.eq.s32.totalorder %s15, 0
    %p36 = por %p34, %p35
    %p37 = scmp.ne.s32.totalorder %s23, %s24
    %p38 = scmp.eq.s32.totalorder %s16, 1
    %p39 = por %p37, %p38
    %p41 = scmp.ne.s32.totalorder %s24, %s40
    %p42 = scmp.eq.s32.totalorder %s16, 0
    %p43 = por %p41, %p42
    %s45 = sadd.s32 %s44, 1
    %p48 = scmp.eq.s32.totalorder %s10, 1
    %p49 = scmp.ne.s32.totalorder %s44, %s46
    %p50 = scmp.eq.s32.totalorder %s10, 0
    %p51 = por %p49, %p50
    %p52 = scmp.ne.s32.totalorder %s44, %s46
    %p53 = scmp.eq.s32.totalorder %s15, 1
    %p54 = por %p52, %p53
    %p55 = scmp.ne.s32.totalorder %s46, %s47
    %p56 = scmp.eq.s32.totalorder %s15, 0
    %p57 = por %p55, %p56
    %p58 = scmp.ne.s32.totalorder %s46, %s47
    %p59 = scmp.eq.s32.totalorder %s16, 1
    %p60 = por %p58, %p59
    %p62 = scmp.ne.s32.totalorder %s47, %s61
    %p63 = scmp.eq.s32.totalorder %s16, 0
    %p64 = por %p62, %p63
    %s66 = sadd.s32 %s65, 1
    %p69 = scmp.eq.s32.totalorder %s10, 1
    %p70 = scmp.ne.s32.totalorder %s65, %s67
    %p71 = scmp.eq.s32.totalorder %s10, 0
    %p72 = por %p70, %p71
    %p73 = scmp.ne.s32.totalorder %s65, %s67
    %p74 = scmp.eq.s32.totalorder %s15, 1
    %p75 = por %p73, %p74
    %p76 = scmp.ne.s32.totalorder %s67, %s68
    %p77 = scmp.eq.s32.totalorder %s15, 0
    %p78 = por %p76, %p77
    %p79 = scmp.ne.s32.totalorder %s67, %s68
    %p80 = scmp.eq.s32.totalorder %s16, 1
    %p81 = por %p79, %p80
    %p83 = scmp.ne.s32.totalorder %s68, %s82
    %p84 = scmp.eq.s32.totalorder %s16, 0
    %p85 = por %p83, %p84
    %s87 = sadd.s32 %s86, 1
    %p90 = scmp.eq.s32.totalorder %s10, 1
    %p91 = scmp.ne.s32.totalorder %s86, %s88
    %p92 = scmp.eq.s32.totalorder %s10, 0
    %p93 = por %p91, %p92
    %p94 = scmp.ne.s32.totalorder %s86, %s88
    %p95 = scmp.eq.s32.totalorder %s15, 1
    %p96 = por %p94, %p95
    %p97 = scmp.ne.s32.totalorder %s88, %s89
    %p98 = scmp.eq.s32.totalorder %s15, 0
    %p99 = por %p97, %p98
    %p100 = scmp.ne.s32.totalorder %s88, %s89
    %p101 = scmp.eq.s32.totalorder %s16, 1
    %p102 = por %p100, %p101
    %p104 = scmp.ne.s32.totalorder %s89, %s103
    %p105 = scmp.eq.s32.totalorder %s16, 0
    %p106 = por %p104, %p105
    %s107 = ssub.s32 %s10, %s17
    %p108 = scmp.eq.s32.totalorder %s107, 0
    %s110 = sadd.s32 %s109, 1
    %s111 = scalar_select %p108, %s109, %s110
    %p114 = pneg %p108
    %p115 = scmp.eq.s32.totalorder %s10, 1
    %p116 = por %p114, %p115
    %p117 = scmp.ne.s32.totalorder %s109, %s112
    %p118 = scmp.eq.s32.totalorder %s10, 0
    %p119 = por %p117, %p118
    %p120 = scmp.ne.s32.totalorder %s109, %s112
    %p121 = scmp.eq.s32.totalorder %s15, 1
    %p122 = por %p120, %p121
    %p123 = scmp.ne.s32.totalorder %s112, %s113
    %p124 = scmp.eq.s32.totalorder %s15, 0
    %p125 = por %p123, %p124
    %p126 = scmp.ne.s32.totalorder %s112, %s113
    %p127 = scmp.eq.s32.totalorder %s16, 1
    %p128 = por %p126, %p127
    %p130 = scmp.ne.s32.totalorder %s113, %s129
    %p131 = scmp.eq.s32.totalorder %s16, 0
    %p132 = por %p130, %p131
    %p133 = scmp.le.s32.totalorder 1, %s10
    %p134 = scmp.lt.s32.totalorder %s10, 3
    %p135 = pnand %p133, %p134
    %p136 = pneg %p135
    // Predicated region
    $region9: #{twice_conv.3} parent=5 // pred_check
      _
    $region10: #{twice_conv.3} parent=5 // pred_check_branch
      %138 = sbr.rel (%p135) target = $region12
    $region11: #{twice_conv.3} parent=5 // pred_region
      %s139 = ssub.s32 %s10, 1
      // Predicated region
      $region13: #{twice_conv.3} parent=11 // pred_check
        %p140 = pneg %p57
      $region14: #{twice_conv.3} parent=11 // pred_check_branch
        %142 = sbr.rel (%p140) target = $region16
      $region15: #{twice_conv.3} parent=11 // pred_region
        _
      $region16: #{twice_conv.3} parent=11 // pred_fallthru
        _
      // Predicated region
      $region17: #{twice_conv.3} parent=11 // pred_check
        %p143 = pneg %p78
      $region18: #{twice_conv.3} parent=11 // pred_check_branch
        %145 = sbr.rel (%p143) target = $region20
      $region19: #{twice_conv.3} parent=11 // pred_region
        _
      $region20: #{twice_conv.3} parent=11 // pred_fallthru
        _
      // Predicated region
      $region21: #{twice_conv.3} parent=11 // pred_check
        %p146 = pneg %p99
      $region22: #{twice_conv.3} parent=11 // pred_check_branch
        %148 = sbr.rel (%p146) target = $region24
      $region23: #{twice_conv.3} parent=11 // pred_region
        _
      $region24: #{twice_conv.3} parent=11 // pred_fallthru
        _
    $region12: #{twice_conv.3} parent=5 // pred_fallthru
      _
    %p149 = scmp.lt.s32.totalorder %s10, 2
    // Predicated region
    $region25: #{twice_conv.3} parent=5 // pred_check
      %p150 = pneg %p149
    $region26: #{twice_conv.3} parent=5 // pred_check_branch
      %152 = sbr.rel (%p150) target = $region28
    $region27: #{twice_conv.3} parent=5 // pred_region
      // Predicated region
      $region29: #{twice_conv.3} parent=27 // pred_check
        %p153 = pneg %p30
      $region30: #{twice_conv.3} parent=27 // pred_check_branch
        %155 = sbr.rel (%p153) target = $region32
      $region31: #{twice_conv.3} parent=27 // pred_region
        %p156 = scmp.lt.s32.totalorder %s10, 1
        %s157 = scalar_select %p156, %s10, 1
        %s158 = smul.addr %s157, 2
        %s159 = smul.addr %s158, 4
        %s160 = scalar_lea.vmem %s0, %s159
      $region32: #{twice_conv.3} parent=27 // pred_fallthru
        _
    $region28: #{twice_conv.3} parent=5 // pred_fallthru
      _
    %p161 = scmp.le.s32.totalorder 1, %s10
    %p162 = scmp.lt.s32.totalorder %s10, 3
    %p163 = pnand %p161, %p162
    %p164 = pneg %p163
    // Predicated region
    $region33: #{twice_conv.3} parent=5 // pred_check
      _
    $region34: #{twice_conv.3} parent=5 // pred_check_branch
      %166 = sbr.rel (%p163) target = $region36
    $region35: #{twice_conv.3} parent=5 // pred_region
      %s167 = ssub.s32 %s10, 1
      %p168 = scmp.lt.s32.totalorder %s15, 1
      %s169 = scalar_select %p168, %s15, 1
      %s170 = smul.addr %s169, 2
      %s171 = smul.addr %s170, 4
      %s172 = scalar_lea.vmem %s0, %s171
      %p173 = pneg %p36
      %p174 = pneg %p33
      %p175 = pneg %p57
      %p176 = pneg %p54
      %p177 = pneg %p78
      %p178 = pneg %p75
      %p179 = pneg %p99
      %p180 = pneg %p96
      %p181 = pneg %p125
      %p182 = pneg %p122
      %p183 = scmp.lt.s32.totalorder %s15, 1
      %s184 = scalar_select %p183, %s15, 1
      %s185 = smul.addr %s184, 2
      %s186 = smul.addr %s185, 8
      %s187 = scalar_lea.vmem %s4, %s186
      %p188 = scmp.lt.s32.totalorder %s15, 1
      %s189 = scalar_select %p188, %s15, 1
      %s190 = smul.addr %s189, 2
      %s191 = smul.addr %s190, 4
      %s192 = scalar_lea.vmem %s0, %s191
      %p193 = scmp.lt.s32.totalorder %s15, 1
      %s194 = scalar_select %p193, %s15, 1
      %s195 = smul.addr %s194, 2
      %s196 = smul.addr %s195, 8
      %s197 = scalar_lea.vmem %s4, %s196
      %v199 = vld [vmem:[%s192] sm:$0xf]
      %v200 = vld [vmem:[%s192 + $0x4] sm:$0xf]
      %v201 = vunpack.c.l.bf16 %v199
      %v202 = vunpack.c.l.bf16 %v200
      %v203 = vld [vmem:[%s1] sm:$0x1]
      %v205 = vlaneseq
      %v206 = vshrl.u32 %v205, 7
      %v207 = vsub.s32 0, %v206
      %v208 = vrot.slane %v203, %v207
      %v210 = vmul.f32 %v201, %v208
      %v211 = vmul.f32 %v202, %v208
      %v212 = vld [vmem:[%s2] sm:$0x1]
      %v214 = vlaneseq
      %v215 = vshrl.u32 %v214, 7
      %v216 = vsub.s32 0, %v215
      %v217 = vrot.slane %v212, %v216
      %v219 = vadd.f32 %v210, %v217
      %v220 = vadd.f32 %v211, %v217
      %v221 = vmax.f32 %v219, 0.0
      %v222 = vmax.f32 %v220, 0.0
      %v223 = vpack.c.bf16 %v222, %v221
      %v225 = vshrl.u32 %v223, 16
      %v227 = vrot.slane %v225, 7
      %v228 = vshll.u32 %v223, 16
      %v230 = vor.u32 %v227, %v228
      %vm232 = vcmask 1040384
      %vm233 = vsmask.f32 256
      %vm234 = vmand %vm232, %vm233
      %v235 = vsel %vm234, 0, %v230
      %v236 = vrot.slane %v228, 1
      %v237 = vor.u32 %v225, %v236
      %vm239 = vcmask 1047552
      %vm240 = vsmask.f32 7424
      %vm241 = vmand %vm239, %vm240
      %v242 = vsel %vm241, %v237, 0
      %v243 = vld [vmem:[%s3] sm:$0xf]
      %v244 = vld [vmem:[%s3 + $0x4] sm:$0xf]
      %v245 = vld [vmem:[%s3 + $0x8] sm:$0xf]
      %v246 = vld [vmem:[%s3 + $0xc] sm:$0xf]
      %v247 = vld [vmem:[%s3 + $0x10] sm:$0xf]
      %v248 = vld [vmem:[%s3 + $0x14] sm:$0xf]
      %v249 = vld [vmem:[%s3 + $0x18] sm:$0xf]
      %v250 = vld [vmem:[%s3 + $0x1c] sm:$0xf]
      %v251 = vld [vmem:[%s3 + $0x20] sm:$0xf]
      %v252 = vld [vmem:[%s3 + $0x24] sm:$0xf]
      %v253 = vld [vmem:[%s3 + $0x28] sm:$0xf]
      %v254 = vld [vmem:[%s3 + $0x2c] sm:$0xf]
      %v255 = vld [vmem:[%s3 + $0x30] sm:$0xf]
      %v256 = vld [vmem:[%s3 + $0x34] sm:$0xf]
      %v257 = vld [vmem:[%s3 + $0x38] sm:$0xf]
      %v258 = vld [vmem:[%s3 + $0x3c] sm:$0xf]
      %s259 = scalar_lea.vmem %s3, 64
      %v260 = vld [vmem:[%s259] sm:$0xf]
      %v261 = vld [vmem:[%s259 + $0x4] sm:$0xf]
      %v262 = vld [vmem:[%s259 + $0x8] sm:$0xf]
      %v263 = vld [vmem:[%s259 + $0xc] sm:$0xf]
      %v264 = vld [vmem:[%s259 + $0x10] sm:$0xf]
      %v265 = vld [vmem:[%s259 + $0x14] sm:$0xf]
      %v266 = vld [vmem:[%s259 + $0x18] sm:$0xf]
      %v267 = vld [vmem:[%s259 + $0x1c] sm:$0xf]
      %v268 = vld [vmem:[%s259 + $0x20] sm:$0xf]
      %v269 = vld [vmem:[%s259 + $0x24] sm:$0xf]
      %v270 = vld [vmem:[%s259 + $0x28] sm:$0xf]
      %v271 = vld [vmem:[%s259 + $0x2c] sm:$0xf]
      %v272 = vld [vmem:[%s259 + $0x30] sm:$0xf]
      %v273 = vld [vmem:[%s259 + $0x34] sm:$0xf]
      %v274 = vld [vmem:[%s259 + $0x38] sm:$0xf]
      %v275 = vld [vmem:[%s259 + $0x3c] sm:$0xf]
      %v292 = vunpack.c.l.b16 %v260
      %v293 = vunpack.c.l.b16 %v261
      %v294 = vunpack.c.l.b16 %v262
      %v295 = vunpack.c.l.b16 %v263
      %v296 = vunpack.c.l.b16 %v264
      %v297 = vunpack.c.l.b16 %v265
      %v298 = vunpack.c.l.b16 %v266
      %v299 = vunpack.c.l.b16 %v267
      %v300 = vunpack.c.l.b16 %v268
      %v301 = vunpack.c.l.b16 %v269
      %v302 = vunpack.c.l.b16 %v270
      %v303 = vunpack.c.l.b16 %v271
      %v304 = vunpack.c.l.b16 %v272
      %v305 = vunpack.c.l.b16 %v273
      %v306 = vunpack.c.l.b16 %v274
      %v307 = vunpack.c.l.b16 %v275
      %v308 = vpack.c.b16 %v293, %v292
      %v309 = vpack.c.b16 %v295, %v294
      %v310 = vpack.c.b16 %v297, %v296
      %v311 = vpack.c.b16 %v299, %v298
      %v312 = vpack.c.b16 %v301, %v300
      %v313 = vpack.c.b16 %v303, %v302
      %v314 = vpack.c.b16 %v305, %v304
      %v315 = vpack.c.b16 %v307, %v306
      %324 = vmatprep.subr.bf16.mxu0 0
      %325 = vmatpush1.bf16.msra.mxu0 %v315
      %326 = vmatprep.subr.bf16.mxu0 0
      %327 = vmatpush1.bf16.msra.mxu0 %v314
      %328 = vmatprep.subr.bf16.mxu0 0
      %329 = vmatpush1.bf16.msra.mxu0 %v313
      %330 = vmatprep.subr.bf16.mxu0 0
      %331 = vmatpush1.bf16.msra.mxu0 %v312
      %332 = vmatprep.subr.bf16.mxu0 0
      %333 = vmatpush1.bf16.msra.mxu0 %v311
      %334 = vmatprep.subr.bf16.mxu0 0
      %335 = vmatpush1.bf16.msra.mxu0 %v310
      %336 = vmatprep.subr.bf16.mxu0 0
      %337 = vmatpush1.bf16.msra.mxu0 %v309
      %338 = vmatprep.subr.bf16.mxu0 0
      %339 = vmatpush1.bf16.msra.mxu0 %v308
      %340 = vmatprep.subr.bf16.mxu0 0
      %341 = vmatpush2.bf16.msra.mxu0 0
      %342 = vmatprep.subr.bf16.mxu0 0
      %343 = vmatpush2.bf16.msra.mxu0 0
      %344 = vmatprep.subr.bf16.mxu0 0
      %345 = vmatpush2.bf16.msra.mxu0 0
      %346 = vmatprep.subr.bf16.mxu0 0
      %347 = vmatpush2.bf16.msra.mxu0 0
      %348 = vmatprep.subr.bf16.mxu0 0
      %349 = vmatpush2.bf16.msra.mxu0 0
      %350 = vmatprep.subr.bf16.mxu0 0
      %351 = vmatpush2.bf16.msra.mxu0 0
      %352 = vmatprep.subr.bf16.mxu0 0
      %353 = vmatpush2.bf16.msra.mxu0 0
      %354 = vmatprep.subr.bf16.mxu0 0
      %355 = vmatpush2.bf16.msra.mxu0 0
      %356 = vmatprep.mubr.bf16.mxu0 0
      %357 = vmatmul.mubr.bf16.gmra.mxu0 %v223
      %v358 = vpop.f32.mrf.mxu0
      %v359 = vadd.f32 0.0, %v358
      %v360 = vpop.f32.mrf.mxu0
      %v361 = vpop.f32.mrf.mxu0
      %v362 = vadd.f32 0.0, %v361
      %v363 = vpop.f32.mrf.mxu0
      %364 = vdwg.mxu0
      %v381 = vunpack.c.l.b16 %v243
      %v382 = vunpack.c.l.b16 %v244
      %v383 = vunpack.c.l.b16 %v245
      %v384 = vunpack.c.l.b16 %v246
      %v385 = vunpack.c.l.b16 %v247
      %v386 = vunpack.c.l.b16 %v248
      %v387 = vunpack.c.l.b16 %v249
      %v388 = vunpack.c.l.b16 %v250
      %v389 = vunpack.c.l.b16 %v251
      %v390 = vunpack.c.l.b16 %v252
      %v391 = vunpack.c.l.b16 %v253
      %v392 = vunpack.c.l.b16 %v254
      %v393 = vunpack.c.l.b16 %v255
      %v394 = vunpack.c.l.b16 %v256
      %v395 = vunpack.c.l.b16 %v257
      %v396 = vunpack.c.l.b16 %v258
      %v397 = vpack.c.b16 %v382, %v381
      %v398 = vpack.c.b16 %v384, %v383
      %v399 = vpack.c.b16 %v386, %v385
      %v400 = vpack.c.b16 %v388, %v387
      %v401 = vpack.c.b16 %v390, %v389
      %v402 = vpack.c.b16 %v392, %v391
      %v403 = vpack.c.b16 %v394, %v393
      %v404 = vpack.c.b16 %v396, %v395
      %413 = vmatprep.subr.bf16.mxu0 0
      %414 = vmatpush1.bf16.msra.mxu0 %v404
      %415 = vmatprep.subr.bf16.mxu0 0
      %416 = vmatpush1.bf16.msra.mxu0 %v403
      %417 = vmatprep.subr.bf16.mxu0 0
      %418 = vmatpush1.bf16.msra.mxu0 %v402
      %419 = vmatprep.subr.bf16.mxu0 0
      %420 = vmatpush1.bf16.msra.mxu0 %v401
      %421 = vmatprep.subr.bf16.mxu0 0
      %422 = vmatpush1.bf16.msra.mxu0 %v400
      %423 = vmatprep.subr.bf16.mxu0 0
      %424 = vmatpush1.bf16.msra.mxu0 %v399
      %425 = vmatprep.subr.bf16.mxu0 0
      %426 = vmatpush1.bf16.msra.mxu0 %v398
      %427 = vmatprep.subr.bf16.mxu0 0
      %428 = vmatpush1.bf16.msra.mxu0 %v397
      %429 = vmatprep.subr.bf16.mxu0 0
      %430 = vmatpush2.bf16.msra.mxu0 0
      %431 = vmatprep.subr.bf16.mxu0 0
      %432 = vmatpush2.bf16.msra.mxu0 0
      %433 = vmatprep.subr.bf16.mxu0 0
      %434 = vmatpush2.bf16.msra.mxu0 0
      %435 = vmatprep.subr.bf16.mxu0 0
      %436 = vmatpush2.bf16.msra.mxu0 0
      %437 = vmatprep.subr.bf16.mxu0 0
      %438 = vmatpush2.bf16.msra.mxu0 0
      %439 = vmatprep.subr.bf16.mxu0 0
      %440 = vmatpush2.bf16.msra.mxu0 0
      %441 = vmatprep.subr.bf16.mxu0 0
      %442 = vmatpush2.bf16.msra.mxu0 0
      %443 = vmatprep.subr.bf16.mxu0 0
      %444 = vmatpush2.bf16.msra.mxu0 0
      %445 = vmatprep.mubr.bf16.mxu0 0
      %446 = vmatmul.mubr.bf16.gmra.mxu0 %v235
      %v447 = vpop.f32.mrf.mxu0
      %v448 = vadd.f32 %v359, %v447
      %v449 = vpop.f32.mrf.mxu0
      %v450 = vpop.f32.mrf.mxu0
      %v451 = vadd.f32 %v362, %v450
      %v452 = vpop.f32.mrf.mxu0
      %453 = vdwg.mxu0
      %s454 = scalar_lea.vmem %s3, 128
      %v455 = vld [vmem:[%s454] sm:$0xf]
      %v456 = vld [vmem:[%s454 + $0x4] sm:$0xf]
      %v457 = vld [vmem:[%s454 + $0x8] sm:$0xf]
      %v458 = vld [vmem:[%s454 + $0xc] sm:$0xf]
      %v459 = vld [vmem:[%s454 + $0x10] sm:$0xf]
      %v460 = vld [vmem:[%s454 + $0x14] sm:$0xf]
      %v461 = vld [vmem:[%s454 + $0x18] sm:$0xf]
      %v462 = vld [vmem:[%s454 + $0x1c] sm:$0xf]
      %v463 = vld [vmem:[%s454 + $0x20] sm:$0xf]
      %v464 = vld [vmem:[%s454 + $0x24] sm:$0xf]
      %v465 = vld [vmem:[%s454 + $0x28] sm:$0xf]
      %v466 = vld [vmem:[%s454 + $0x2c] sm:$0xf]
      %v467 = vld [vmem:[%s454 + $0x30] sm:$0xf]
      %v468 = vld [vmem:[%s454 + $0x34] sm:$0xf]
      %v469 = vld [vmem:[%s454 + $0x38] sm:$0xf]
      %v470 = vld [vmem:[%s454 + $0x3c] sm:$0xf]
      %v487 = vunpack.c.l.b16 %v455
      %v488 = vunpack.c.l.b16 %v456
      %v489 = vunpack.c.l.b16 %v457
      %v490 = vunpack.c.l.b16 %v458
      %v491 = vunpack.c.l.b16 %v459
      %v492 = vunpack.c.l.b16 %v460
      %v493 = vunpack.c.l.b16 %v461
      %v494 = vunpack.c.l.b16 %v462
      %v495 = vunpack.c.l.b16 %v463
      %v496 = vunpack.c.l.b16 %v464
      %v497 = vunpack.c.l.b16 %v465
      %v498 = vunpack.c.l.b16 %v466
      %v499 = vunpack.c.l.b16 %v467
      %v500 = vunpack.c.l.b16 %v468
      %v501 = vunpack.c.l.b16 %v469
      %v502 = vunpack.c.l.b16 %v470
      %v503 = vpack.c.b16 %v488, %v487
      %v504 = vpack.c.b16 %v490, %v489
      %v505 = vpack.c.b16 %v492, %v491
      %v506 = vpack.c.b16 %v494, %v493
      %v507 = vpack.c.b16 %v496, %v495
      %v508 = vpack.c.b16 %v498, %v497
      %v509 = vpack.c.b16 %v500, %v499
      %v510 = vpack.c.b16 %v502, %v501
      %519 = vmatprep.subr.bf16.mxu0 0
      %520 = vmatpush1.bf16.msra.mxu0 %v510
      %521 = vmatprep.subr.bf16.mxu0 0
      %522 = vmatpush1.bf16.msra.mxu0 %v509
      %523 = vmatprep.subr.bf16.mxu0 0
      %524 = vmatpush1.bf16.msra.mxu0 %v508
      %525 = vmatprep.subr.bf16.mxu0 0
      %526 = vmatpush1.bf16.msra.mxu0 %v507
      %527 = vmatprep.subr.bf16.mxu0 0
      %528 = vmatpush1.bf16.msra.mxu0 %v506
      %529 = vmatprep.subr.bf16.mxu0 0
      %530 = vmatpush1.bf16.msra.mxu0 %v505
      %531 = vmatprep.subr.bf16.mxu0 0
      %532 = vmatpush1.bf16.msra.mxu0 %v504
      %533 = vmatprep.subr.bf16.mxu0 0
      %534 = vmatpush1.bf16.msra.mxu0 %v503
      %535 = vmatprep.subr.bf16.mxu0 0
      %536 = vmatpush2.bf16.msra.mxu0 0
      %537 = vmatprep.subr.bf16.mxu0 0
      %538 = vmatpush2.bf16.msra.mxu0 0
      %539 = vmatprep.subr.bf16.mxu0 0
      %540 = vmatpush2.bf16.msra.mxu0 0
      %541 = vmatprep.subr.bf16.mxu0 0
      %542 = vmatpush2.bf16.msra.mxu0 0
      %543 = vmatprep.subr.bf16.mxu0 0
      %544 = vmatpush2.bf16.msra.mxu0 0
      %545 = vmatprep.subr.bf16.mxu0 0
      %546 = vmatpush2.bf16.msra.mxu0 0
      %547 = vmatprep.subr.bf16.mxu0 0
      %548 = vmatpush2.bf16.msra.mxu0 0
      %549 = vmatprep.subr.bf16.mxu0 0
      %550 = vmatpush2.bf16.msra.mxu0 0
      %551 = vmatprep.mubr.bf16.mxu0 0
      %552 = vmatmul.mubr.bf16.gmra.mxu0 %v242
      %v553 = vpop.f32.mrf.mxu0
      %v554 = vadd.f32 0.0, %v553
      %v555 = vpop.f32.mrf.mxu0
      %v556 = vpop.f32.mrf.mxu0
      %v557 = vadd.f32 0.0, %v556
      %v558 = vpop.f32.mrf.mxu0
      %559 = vdwg.mxu0
      %v560 = vadd.f32 %v448, %v554
      %v561 = vadd.f32 %v451, %v557
      %v562 = vmax.f32 %v560, 0.0
      %v563 = vmax.f32 %v561, 0.0
      %564 = vst [vmem:[%s197] sm:$0xff] %v562
      %565 = vst [vmem:[%s197 + $0x8] sm:$0xff] %v563
      %p566 = scmp.lt.s32.totalorder %s15, 1
      %s567 = scalar_select %p566, %s15, 1
      %s568 = smul.addr %s567, 2
      %s569 = smul.addr %s568, 8
      %s570 = scalar_lea.vmem %s4, %s569
      // Predicated region
      $region37: #{twice_conv.3} parent=35 // pred_check
        %p571 = pneg %p122
      $region38: #{twice_conv.3} parent=35 // pred_check_branch
        %573 = sbr.rel (%p571) target = $region40
      $region39: #{twice_conv.3} parent=35 // pred_region
        _
      $region40: #{twice_conv.3} parent=35 // pred_fallthru
        _
    $region36: #{twice_conv.3} parent=5 // pred_fallthru
      _
    %p574 = scmp.le.s32.totalorder 2, %s10
    // Predicated region
    $region41: #{twice_conv.3} parent=5 // pred_check
      %p575 = pneg %p574
    $region42: #{twice_conv.3} parent=5 // pred_check_branch
      %577 = sbr.rel (%p575) target = $region44
    $region43: #{twice_conv.3} parent=5 // pred_region
      %s578 = ssub.s32 %s10, 2
      // Predicated region
      $region45: #{twice_conv.3} parent=43 // pred_check
        %p579 = pneg %p128
      $region46: #{twice_conv.3} parent=43 // pred_check_branch
        %581 = sbr.rel (%p579) target = $region48
      $region47: #{twice_conv.3} parent=43 // pred_region
        %p582 = scmp.lt.s32.totalorder %s16, 1
        %s583 = scalar_select %p582, %s16, 1
        %s584 = smul.addr %s583, 2
        %s585 = smul.addr %s584, 8
        %s586 = scalar_lea.vmem %s4, %s585
      $region48: #{twice_conv.3} parent=43 // pred_fallthru
        _
    $region44: #{twice_conv.3} parent=5 // pred_fallthru
      _
  $region6: #{twice_conv.3} parent=0 // loop_footer
    %s14 = sadd.s32 1, %s10
  $region7: #{twice_conv.3} parent=0 // loop_footer_branch
    %9 = sbr.rel target = $region3
  $region8: #{twice_conv.3} parent=0 // loop_exit
    _

</llo_original>
